<compile_context>
chip_gen: v5e
topology: v5e:2x2
jax: 0.10.0
libtpu: 0.0.40
codegen_flags: <defaults>
</compile_context>

<pallas_src>
import jax
import jax.numpy as jnp
from jax.experimental import pallas as pl
from jax.experimental.pallas import tpu as pltpu

# ----- small synthetic CLIP config (toy scale) -----
N_CLASSES = 2            # number of classnames ("Nuclei" prompts)
CTX = 8                  # context length
VOCAB = 64               # vocab size
D = 32                   # transformer width
H = 4                    # attention heads
HD = D // H              # head dim
FF = 4 * D               # MLP hidden
LAYERS = 2               # transformer layers
EMBED = 32               # text_projection output dim (== image feature width)
C_IMG = EMBED            # image feature channels (1024 in real CLIP RN50)
ADAPTER_HIDDEN = C_IMG // 4
NL = N_CLASSES * CTX
EPS = 1e-5

SOT_ID = VOCAB - 2
EOT_ID = VOCAB - 1       # largest id -> argmax(tokens) gives EOT position (as in CLIP)


def _layernorm(x, w, b):
    mu = jnp.mean(x, axis=-1, keepdims=True)
    xc = x - mu
    var = jnp.mean(xc * xc, axis=-1, keepdims=True)
    return xc * jax.lax.rsqrt(var + EPS) * w + b


# ---------------- fused Pallas kernel: full CustomCLIP_nc forward ----------------

def clip_kernel(img_ref, aw1_ref, aw2_ref, scale_ref,              # image path
                x0_ref, eotsel_ref,                                # text activations / EOT select
                ln1w_ref, ln1b_ref, wqkv_ref, bqkv_ref, wo_ref, bo_ref,
                ln2w_ref, ln2b_ref, wfc_ref, bfc_ref, wpr_ref, bpr_ref,
                lnfw_ref, lnfb_ref, tproj_ref,                     # stacked text weights
                out_ref):
    f32 = jnp.float32
    bf16 = jnp.bfloat16

    # ================= text encoder: all layers fused =================
    x = x0_ref[...]                                                # (N*L, D) f32 residual stream

    # causal mask: built ONCE, hoisted out of the layer loop
    qi = jax.lax.broadcasted_iota(jnp.int32, (CTX, CTX), 0)
    ki = jax.lax.broadcasted_iota(jnp.int32, (CTX, CTX), 1)
    causal = jnp.where(ki > qi, f32(-1e9), f32(0.0))               # (L, L)
    attn_scale = f32(HD ** -0.5)

    for li in range(LAYERS):                                       # static unroll over stacked weights
        # ---- attention: ONE fused lane-dense QKV matmul (bf16 operands, f32 accum) ----
        h = _layernorm(x, ln1w_ref[li], ln1b_ref[li])              # (N*L, D) f32
        qkv = jnp.dot(h.astype(bf16), wqkv_ref[li],
                      preferred_element_type=f32) + bqkv_ref[li]   # (N*L, 3D)

        # per-head scores / PV: heads sliced from the activation (static lane offsets),
        # N-batched einsums, statically unrolled (H small at this scale).
        head_ctx = []
        for hh in range(H):
            qh = qkv[:, hh * HD:(hh + 1) * HD].reshape(N_CLASSES, CTX, HD)
            kh = qkv[:, D + hh * HD:D + (hh + 1) * HD].reshape(N_CLASSES, CTX, HD)
            vh = qkv[:, 2 * D + hh * HD:2 * D + (hh + 1) * HD].reshape(N_CLASSES, CTX, HD)

            s = jnp.einsum('nqe,nke->nqk', qh.astype(bf16), kh.astype(bf16),
                           preferred_element_type=f32) * attn_scale + causal[None]
            s = s - jnp.max(s, axis=-1, keepdims=True)
            p = jnp.exp(s)                                         # f32 softmax
            p = p * pl.reciprocal(jnp.sum(p, axis=-1, keepdims=True), approx=True)
            ch = jnp.einsum('nqk,nke->nqe', p.astype(bf16), vh.astype(bf16),
                            preferred_element_type=f32)            # (N, L, HD)
            head_ctx.append(ch.reshape(NL, HD))

        # heads concatenated back on the lane axis (standard head-major layout of w_o)
        ctx = jnp.concatenate(head_ctx, axis=-1)                   # (N*L, D)

        # ---- ONE fused lane-dense output projection ----
        x = x + jnp.dot(ctx.astype(bf16), wo_ref[li],
                        preferred_element_type=f32) + bo_ref[li]

        # ---- MLP with QuickGELU (element-wise math stays f32 for v5e VPU/EUP) ----
        h = _layernorm(x, ln2w_ref[li], ln2b_ref[li])
        hfc = jnp.dot(h.astype(bf16), wfc_ref[li],
                      preferred_element_type=f32) + bfc_ref[li]
        hfc = hfc * jax.nn.sigmoid(1.702 * hfc)                    # QuickGELU
        x = x + jnp.dot(hfc.astype(bf16), wpr_ref[li],
                        preferred_element_type=f32) + bpr_ref[li]

    # ---- ln_final -> lane-dense EOT selection (one matmul) -> text_projection -> L2 norm ----
    xf = _layernorm(x, lnfw_ref[...], lnfb_ref[...])               # (N*L, D)
    x_eot = jnp.dot(eotsel_ref[...], xf, preferred_element_type=f32)        # (N, D)
    tf = jnp.dot(x_eot.astype(bf16), tproj_ref[...], preferred_element_type=f32)  # (N, EMBED)
    tf = tf * jax.lax.rsqrt(jnp.sum(tf * tf, axis=-1, keepdims=True))

    # ================= image path: Adapter_nc + blend + L2 norm + logits =================
    xi = img_ref[...]                                              # (M, C) f32
    a = jnp.maximum(jnp.dot(xi.astype(bf16), aw1_ref[...], preferred_element_type=f32), 0.0)
    a = jnp.maximum(jnp.dot(a.astype(bf16), aw2_ref[...], preferred_element_type=f32), 0.0)
    blended = 0.4 * a + 0.6 * xi                                   # ratio = 0.4 (as in reference)
    imgn = blended * jax.lax.rsqrt(jnp.sum(blended * blended, axis=-1, keepdims=True))

    # logits emitted TRANSPOSED: (N_CLASSES, M) with M on the lane axis -> unmasked stores
    logit_scale = jnp.exp(scale_ref[...])                          # (1, 1)
    out_ref[...] = logit_scale * jax.lax.dot_general(
        tf.astype(bf16), imgn.astype(bf16), (((1,), (1,)), ((), ())),
        preferred_element_type=f32)                                # (N_CLASSES, M)


# ---------------- wrapper ----------------

def _vmem_spec():
    return pl.BlockSpec(memory_space=pltpu.MemorySpace.VMEM)


@jax.jit
def custom_clip_forward(image_features, tokens, params):
    """image_features: (B, C, H, W) f32, tokens: (N_CLASSES, CTX) i32 -> (B, N_CLASSES, H, W)."""
    B, C, Hs, Ws = image_features.shape
    img = jnp.transpose(image_features, (0, 2, 3, 1)).reshape(-1, C)   # (M, C)
    M = img.shape[0]

    # token-embedding gather + positional embedding (JAX glue, like nn.Embedding)
    x0 = (params['tok_emb'][tokens] + params['pos_emb'][None]).reshape(NL, D)
    # lane-dense EOT selection matrix (N, N*CTX): row n selects token argmax(tokens[n]) of prompt n
    eot_pos = jnp.argmax(tokens, axis=-1)                              # (N,)  EOT has largest id
    eot_sel = jax.nn.one_hot(jnp.arange(N_CLASSES) * CTX + eot_pos,
                             NL, dtype=jnp.float32)                    # (N, N*CTX)

    kernel_inputs = (
        img, params['adapter_w1'], params['adapter_w2'], params['logit_scale'],
        x0, eot_sel,
        params['ln1_w'], params['ln1_b'],
        params['w_qkv'], params['b_qkv'], params['w_o'], params['b_o'],
        params['ln2_w'], params['ln2_b'],
        params['w_fc'], params['b_fc'], params['w_proj'], params['b_proj'],
        params['lnf_w'], params['lnf_b'], params['text_proj'],
    )

    # --- real cost estimate + VMEM limit derived from actual shapes ---
    flops_layer = (2 * NL * D * 3 * D                                   # fused QKV
                   + 2 * 2 * N_CLASSES * H * CTX * CTX * HD             # scores + PV
                   + 2 * NL * D * D                                     # out projection
                   + 2 * NL * D * FF + 2 * NL * FF * D)                 # MLP
    flops = (LAYERS * flops_layer
             + 2 * N_CLASSES * NL * D + 2 * N_CLASSES * D * EMBED       # EOT select + text proj
             + 2 * M * C_IMG * ADAPTER_HIDDEN * 2                       # adapter
             + 2 * M * N_CLASSES * EMBED)                               # logits
    transcendentals = LAYERS * (N_CLASSES * H * CTX * CTX + NL * FF) + M + N_CLASSES + 1
    in_bytes = sum(a.size * a.dtype.itemsize for a in kernel_inputs)
    out_bytes = N_CLASSES * M * 4
    bytes_accessed = in_bytes + out_bytes
    vmem_limit = int(min(48 << 20, max(32 << 20, 4 * bytes_accessed + (2 << 20))))

    logits_t = pl.pallas_call(
        clip_kernel,
        out_shape=jax.ShapeDtypeStruct((N_CLASSES, M), jnp.float32),    # lane-dense (N, M)
        in_specs=[_vmem_spec() for _ in kernel_inputs],
        out_specs=_vmem_spec(),
        compiler_params=pltpu.CompilerParams(vmem_limit_bytes=vmem_limit),
        cost_estimate=pl.CostEstimate(flops=int(flops),
                                      transcendentals=int(transcendentals),
                                      bytes_accessed=int(bytes_accessed)),
    )(*kernel_inputs)

    # (N, M) -> (B, N_CLASSES, H, W)
    return jnp.transpose(logits_t.reshape(N_CLASSES, B, Hs, Ws), (1, 0, 2, 3))


# ---------------- deterministic parameter init (natural shapes) ----------------

def init_params(key):
    keys = jax.random.split(key, 6 + LAYERS)
    p = {
        'tok_emb': 0.02 * jax.random.normal(keys[0], (VOCAB, D), jnp.float32),
        'pos_emb': 0.01 * jax.random.normal(keys[1], (CTX, D), jnp.float32),
        'lnf_w': jnp.ones((D,), jnp.float32), 'lnf_b': jnp.zeros((D,), jnp.float32),
        'text_proj': (D ** -0.5) * jax.random.normal(keys[2], (D, EMBED), jnp.float32),
        'adapter_w1': 0.05 * jax.random.normal(keys[3], (C_IMG, ADAPTER_HIDDEN), jnp.float32),
        'adapter_w2': 0.05 * jax.random.normal(keys[4], (ADAPTER_HIDDEN, C_IMG), jnp.float32),
        'logit_scale': jnp.full((1, 1), jnp.log(1.0 / 0.07), jnp.float32),
        'blocks': [],
    }
    for li in range(LAYERS):
        bk = jax.random.split(keys[6 + li], 4)
        p['blocks'].append({
            'ln1_w': jnp.ones((D,), jnp.float32), 'ln1_b': jnp.zeros((D,), jnp.float32),
            'w_qkv': 0.02 * jax.random.normal(bk[0], (D, 3 * D), jnp.float32),
            'b_qkv': jnp.zeros((3 * D,), jnp.float32),
            'w_o': 0.02 * jax.random.normal(bk[1], (D, D), jnp.float32),
            'b_o': jnp.zeros((D,), jnp.float32),
            'ln2_w': jnp.ones((D,), jnp.float32), 'ln2_b': jnp.zeros((D,), jnp.float32),
            'w_fc': 0.02 * jax.random.normal(bk[2], (D, FF), jnp.float32),
            'b_fc': jnp.zeros((FF,), jnp.float32),
            'w_proj': 0.02 * jax.random.normal(bk[3], (FF, D), jnp.float32),
            'b_proj': jnp.zeros((D,), jnp.float32),
        })
    return p


def pack_params(raw):
    """Pack weights into the kernel layout.

    - per-layer tensors stacked along a leading (LAYERS, ...) axis (layers fused in-kernel)
    - matmul weights stored in bf16 (MXU-native; halves VMEM/DMA bytes); kept fused / lane-dense
      (w_qkv stays (D, 3D), w_o stays (D, D)) — NO per-head or per-class splitting/tiling
    - 1-D bias / LN vectors reshaped to lane-major (1, X) / (LAYERS, 1, X), kept f32
    """
    bf16 = jnp.bfloat16

    def stk(name):
        return jnp.stack([blk[name] for blk in raw['blocks']])

    return {
        'tok_emb': raw['tok_emb'], 'pos_emb': raw['pos_emb'],
        'adapter_w1': raw['adapter_w1'].astype(bf16),
        'adapter_w2': raw['adapter_w2'].astype(bf16),
        'logit_scale': raw['logit_scale'],
        'ln1_w': stk('ln1_w').reshape(LAYERS, 1, D), 'ln1_b': stk('ln1_b').reshape(LAYERS, 1, D),
        'w_qkv': stk('w_qkv').astype(bf16),                        # (LAYERS, D, 3D)
        'b_qkv': stk('b_qkv').reshape(LAYERS, 1, 3 * D),           # (LAYERS, 1, 3D) f32
        'w_o': stk('w_o').astype(bf16),                            # (LAYERS, D, D)
        'b_o': stk('b_o').reshape(LAYERS, 1, D),
        'ln2_w': stk('ln2_w').reshape(LAYERS, 1, D), 'ln2_b': stk('ln2_b').reshape(LAYERS, 1, D),
        'w_fc': stk('w_fc').astype(bf16), 'b_fc': stk('b_fc').reshape(LAYERS, 1, FF),
        'w_proj': stk('w_proj').astype(bf16), 'b_proj': stk('b_proj').reshape(LAYERS, 1, D),
        'lnf_w': raw['lnf_w'].reshape(1, D), 'lnf_b': raw['lnf_b'].reshape(1, D),
        'text_proj': raw['text_proj'].astype(bf16),
    }


# ---------------- synthetic tokenizer ----------------
# TODO(synk): clip.tokenize (BPE over the 49k-merge vocab) has no Pallas/JAX equivalent;
# words are mapped to deterministic ids in a small synthetic vocab instead.
def tokenize(prompts):
    rows = []
    for p in prompts:
        ids = [SOT_ID]
        for w in p.replace('.', '').replace(',', '').split():
            ids.append(2 + (sum(ord(c) for c in w) % (VOCAB - 4)))
        ids = ids[:CTX - 1] + [EOT_ID]
        ids = ids + [0] * (CTX - len(ids))
        rows.append(ids)
    return jnp.asarray(rows, dtype=jnp.int32)


if __name__ == "__main__":
    # prompts built exactly like TextEncoder_nc with the 'Nuclei' template
    classnames_nc = ['benign_nucleus', 'malignant_nucleus']
    temp = 'a photo of a {}, a type of histopathology.'
    prompts = [temp.format(c.replace('_', ' ')) for c in classnames_nc]
    tokens = tokenize(prompts)                                     # (N_CLASSES, CTX) int32

    key = jax.random.PRNGKey(0)
    k_param, k_img = jax.random.split(key)
    params = pack_params(init_params(k_param))

    B, Hs, Ws = 2, 4, 4
    image_features = jax.random.normal(k_img, (B, C_IMG, Hs, Ws), jnp.float32)

    logits = jax.block_until_ready(custom_clip_forward(image_features, tokens, params))
    assert logits.shape == (B, N_CLASSES, Hs, Ws)
    assert bool(jnp.all(jnp.isfinite(logits)))
    print("KERNEL_OK")
</pallas_src>

<mosaic_0001>
module attributes {stable_mosaic.version = 11 : i64} {
  func.func @clip_kernel(%arg0: memref<32x32xf32, #tpu.memory_space<vmem>>, %arg1: memref<32x8xbf16, #tpu.memory_space<vmem>>, %arg2: memref<8x32xbf16, #tpu.memory_space<vmem>>, %arg3: memref<1x1xf32, #tpu.memory_space<vmem>>, %arg4: memref<16x32xf32, #tpu.memory_space<vmem>>, %arg5: memref<2x16xf32, #tpu.memory_space<vmem>>, %arg6: memref<2x1x32xf32, #tpu.memory_space<vmem>>, %arg7: memref<2x1x32xf32, #tpu.memory_space<vmem>>, %arg8: memref<2x32x96xbf16, #tpu.memory_space<vmem>>, %arg9: memref<2x1x96xf32, #tpu.memory_space<vmem>>, %arg10: memref<2x32x32xbf16, #tpu.memory_space<vmem>>, %arg11: memref<2x1x32xf32, #tpu.memory_space<vmem>>, %arg12: memref<2x1x32xf32, #tpu.memory_space<vmem>>, %arg13: memref<2x1x32xf32, #tpu.memory_space<vmem>>, %arg14: memref<2x32x128xbf16, #tpu.memory_space<vmem>>, %arg15: memref<2x1x128xf32, #tpu.memory_space<vmem>>, %arg16: memref<2x128x32xbf16, #tpu.memory_space<vmem>>, %arg17: memref<2x1x32xf32, #tpu.memory_space<vmem>>, %arg18: memref<1x32xf32, #tpu.memory_space<vmem>>, %arg19: memref<1x32xf32, #tpu.memory_space<vmem>>, %arg20: memref<32x32xbf16, #tpu.memory_space<vmem>>, %arg21: memref<2x32xf32, #tpu.memory_space<vmem>>) attributes {dimension_semantics = [], scalar_prefetch = 0 : i64, scratch_operands = 0 : i64, tpu.core_type = #tpu.core_type<tc>} {
    %c0 = arith.constant 0 : index
    %c0_0 = arith.constant 0 : index
    %0 = vector.load %arg4[%c0, %c0_0] : memref<16x32xf32, #tpu.memory_space<vmem>>, vector<16x32xf32>
    %1 = tpu.iota {dimensions = array<i32: 0>} : vector<8x8xi32>
    %2 = tpu.iota {dimensions = array<i32: 1>} : vector<8x8xi32>
    %3 = arith.cmpi sgt, %2, %1 : vector<8x8xi32>
    %cst = arith.constant -1.000000e+09 : f32
    %cst_1 = arith.constant 0.000000e+00 : f32
    %4 = vector.broadcast %cst : f32 to vector<8x8xf32>
    %5 = vector.broadcast %cst_1 : f32 to vector<8x8xf32>
    %6 = arith.select %3, %4, %5 : vector<8x8xi1>, vector<8x8xf32>
    %c0_2 = arith.constant 0 : index
    %c0_3 = arith.constant 0 : index
    %c0_4 = arith.constant 0 : index
    %7 = vector.load %arg6[%c0_2, %c0_3, %c0_4] : memref<2x1x32xf32, #tpu.memory_space<vmem>>, vector<1x1x32xf32>
    %8 = vector.shape_cast %7 : vector<1x1x32xf32> to vector<1x32xf32>
    %c0_5 = arith.constant 0 : index
    %c0_6 = arith.constant 0 : index
    %c0_7 = arith.constant 0 : index
    %9 = vector.load %arg7[%c0_5, %c0_6, %c0_7] : memref<2x1x32xf32, #tpu.memory_space<vmem>>, vector<1x1x32xf32>
    %10 = vector.shape_cast %9 : vector<1x1x32xf32> to vector<1x32xf32>
    %cst_8 = arith.constant dense<0.000000e+00> : vector<16xf32>
    %11 = vector.multi_reduction <add>, %0, %cst_8 [1] : vector<16x32xf32> to vector<16xf32>
    %12 = vector.shape_cast %11 : vector<16xf32> to vector<16x1xf32>
    %cst_9 = arith.constant 3.200000e+01 : f32
    %13 = vector.broadcast %cst_9 : f32 to vector<16x1xf32>
    %14 = arith.divf %12, %13 : vector<16x1xf32>
    %15 = vector.broadcast %14 : vector<16x1xf32> to vector<16x32xf32>
    %16 = arith.subf %0, %15 : vector<16x32xf32>
    %17 = arith.mulf %16, %16 : vector<16x32xf32>
    %cst_10 = arith.constant dense<0.000000e+00> : vector<16xf32>
    %18 = vector.multi_reduction <add>, %17, %cst_10 [1] : vector<16x32xf32> to vector<16xf32>
    %19 = vector.shape_cast %18 : vector<16xf32> to vector<16x1xf32>
    %cst_11 = arith.constant 3.200000e+01 : f32
    %20 = vector.broadcast %cst_11 : f32 to vector<16x1xf32>
    %21 = arith.divf %19, %20 : vector<16x1xf32>
    %cst_12 = arith.constant 9.99999974E-6 : f32
    %22 = vector.broadcast %cst_12 : f32 to vector<16x1xf32>
    %23 = arith.addf %21, %22 : vector<16x1xf32>
    %24 = math.rsqrt %23 : vector<16x1xf32>
    %25 = vector.broadcast %24 : vector<16x1xf32> to vector<16x32xf32>
    %26 = arith.mulf %16, %25 : vector<16x32xf32>
    %27 = vector.broadcast %8 : vector<1x32xf32> to vector<16x32xf32>
    %28 = arith.mulf %26, %27 : vector<16x32xf32>
    %29 = vector.broadcast %10 : vector<1x32xf32> to vector<16x32xf32>
    %30 = arith.addf %28, %29 : vector<16x32xf32>
    %31 = arith.truncf %30 : vector<16x32xf32> to vector<16x32xbf16>
    %c0_13 = arith.constant 0 : index
    %c0_14 = arith.constant 0 : index
    %c0_15 = arith.constant 0 : index
    %32 = vector.load %arg8[%c0_13, %c0_14, %c0_15] : memref<2x32x96xbf16, #tpu.memory_space<vmem>>, vector<1x32x96xbf16>
    %33 = vector.shape_cast %32 : vector<1x32x96xbf16> to vector<32x96xbf16>
    %cst_16 = arith.constant dense<0.000000e+00> : vector<16x96xf32>
    %34 = tpu.matmul %31, %33, %cst_16 {dimension_numbers = #tpu.dot_dimension_numbers<[1], [0], [0], [1], [0, 0, 1, 1], [], []>} : vector<16x32xbf16>, vector<32x96xbf16>, vector<16x96xf32> -> vector<16x96xf32>
    %c0_17 = arith.constant 0 : index
    %c0_18 = arith.constant 0 : index
    %c0_19 = arith.constant 0 : index
    %35 = vector.load %arg9[%c0_17, %c0_18, %c0_19] : memref<2x1x96xf32, #tpu.memory_space<vmem>>, vector<1x1x96xf32>
    %36 = vector.shape_cast %35 : vector<1x1x96xf32> to vector<1x96xf32>
    %37 = vector.broadcast %36 : vector<1x96xf32> to vector<16x96xf32>
    %38 = arith.addf %34, %37 : vector<16x96xf32>
    %39 = vector.extract_strided_slice %38 {offsets = [0, 0], sizes = [16, 8], strides = [1, 1]} : vector<16x96xf32> to vector<16x8xf32>
    %40 = vector.shape_cast %39 : vector<16x8xf32> to vector<2x8x8xf32>
    %41 = vector.extract_strided_slice %38 {offsets = [0, 32], sizes = [16, 8], strides = [1, 1]} : vector<16x96xf32> to vector<16x8xf32>
    %42 = vector.shape_cast %41 : vector<16x8xf32> to vector<2x8x8xf32>
    %43 = vector.extract_strided_slice %38 {offsets = [0, 64], sizes = [16, 8], strides = [1, 1]} : vector<16x96xf32> to vector<16x8xf32>
    %44 = vector.shape_cast %43 : vector<16x8xf32> to vector<2x8x8xf32>
    %45 = arith.truncf %40 : vector<2x8x8xf32> to vector<2x8x8xbf16>
    %46 = arith.truncf %42 : vector<2x8x8xf32> to vector<2x8x8xbf16>
    "tpu.trace_start"() <{level = 10 : i32, message = "nqe,nke->nqk"}> : () -> ()
    %cst_20 = arith.constant dense<0.000000e+00> : vector<2x8x8xf32>
    %47 = tpu.matmul %45, %46, %cst_20 {dimension_numbers = #tpu.dot_dimension_numbers<[2], [2], [1], [1], [0, 0, 0, 1, 1, 1], [0], [0]>} : vector<2x8x8xbf16>, vector<2x8x8xbf16>, vector<2x8x8xf32> -> vector<2x8x8xf32>
    "tpu.trace_stop"() : () -> ()
    %cst_21 = arith.constant 0.353553385 : f32
    %48 = vector.broadcast %cst_21 : f32 to vector<2x8x8xf32>
    %49 = arith.mulf %47, %48 : vector<2x8x8xf32>
    %50 = vector.shape_cast %6 : vector<8x8xf32> to vector<1x8x8xf32>
    %51 = vector.broadcast %50 : vector<1x8x8xf32> to vector<2x8x8xf32>
    %52 = arith.addf %49, %51 : vector<2x8x8xf32>
    %cst_22 = arith.constant dense<0xFF800000> : vector<2x8xf32>
    %53 = vector.multi_reduction <maximumf>, %52, %cst_22 [2] : vector<2x8x8xf32> to vector<2x8xf32>
    %54 = vector.shape_cast %53 : vector<2x8xf32> to vector<2x8x1xf32>
    %55 = vector.broadcast %54 : vector<2x8x1xf32> to vector<2x8x8xf32>
    %56 = arith.subf %52, %55 : vector<2x8x8xf32>
    %57 = math.exp %56 : vector<2x8x8xf32>
    %cst_23 = arith.constant dense<0.000000e+00> : vector<2x8xf32>
    %58 = vector.multi_reduction <add>, %57, %cst_23 [2] : vector<2x8x8xf32> to vector<2x8xf32>
    %59 = vector.shape_cast %58 : vector<2x8xf32> to vector<2x8x1xf32>
    %60 = tpu.reciprocal %59 {approx = true} : vector<2x8x1xf32> -> vector<2x8x1xf32>
    %61 = vector.broadcast %60 : vector<2x8x1xf32> to vector<2x8x8xf32>
    %62 = arith.mulf %57, %61 : vector<2x8x8xf32>
    %63 = arith.truncf %62 : vector<2x8x8xf32> to vector<2x8x8xbf16>
    %64 = arith.truncf %44 : vector<2x8x8xf32> to vector<2x8x8xbf16>
    "tpu.trace_start"() <{level = 10 : i32, message = "nqk,nke->nqe"}> : () -> ()
    %cst_24 = arith.constant dense<0.000000e+00> : vector<2x8x8xf32>
    %65 = tpu.matmul %63, %64, %cst_24 {dimension_numbers = #tpu.dot_dimension_numbers<[2], [1], [1], [2], [0, 0, 0, 1, 1, 2], [0], [0]>} : vector<2x8x8xbf16>, vector<2x8x8xbf16>, vector<2x8x8xf32> -> vector<2x8x8xf32>
    "tpu.trace_stop"() : () -> ()
    %66 = vector.shape_cast %65 : vector<2x8x8xf32> to vector<16x8xf32>
    %67 = vector.extract_strided_slice %38 {offsets = [0, 8], sizes = [16, 8], strides = [1, 1]} : vector<16x96xf32> to vector<16x8xf32>
    %68 = vector.shape_cast %67 : vector<16x8xf32> to vector<2x8x8xf32>
    %69 = vector.extract_strided_slice %38 {offsets = [0, 40], sizes = [16, 8], strides = [1, 1]} : vector<16x96xf32> to vector<16x8xf32>
    %70 = vector.shape_cast %69 : vector<16x8xf32> to vector<2x8x8xf32>
    %71 = vector.extract_strided_slice %38 {offsets = [0, 72], sizes = [16, 8], strides = [1, 1]} : vector<16x96xf32> to vector<16x8xf32>
    %72 = vector.shape_cast %71 : vector<16x8xf32> to vector<2x8x8xf32>
    %73 = arith.truncf %68 : vector<2x8x8xf32> to vector<2x8x8xbf16>
    %74 = arith.truncf %70 : vector<2x8x8xf32> to vector<2x8x8xbf16>
    "tpu.trace_start"() <{level = 10 : i32, message = "nqe,nke->nqk"}> : () -> ()
    %cst_25 = arith.constant dense<0.000000e+00> : vector<2x8x8xf32>
    %75 = tpu.matmul %73, %74, %cst_25 {dimension_numbers = #tpu.dot_dimension_numbers<[2], [2], [1], [1], [0, 0, 0, 1, 1, 1], [0], [0]>} : vector<2x8x8xbf16>, vector<2x8x8xbf16>, vector<2x8x8xf32> -> vector<2x8x8xf32>
    "tpu.trace_stop"() : () -> ()
    %cst_26 = arith.constant 0.353553385 : f32
    %76 = vector.broadcast %cst_26 : f32 to vector<2x8x8xf32>
    %77 = arith.mulf %75, %76 : vector<2x8x8xf32>
    %78 = vector.shape_cast %6 : vector<8x8xf32> to vector<1x8x8xf32>
    %79 = vector.broadcast %78 : vector<1x8x8xf32> to vector<2x8x8xf32>
    %80 = arith.addf %77, %79 : vector<2x8x8xf32>
    %cst_27 = arith.constant dense<0xFF800000> : vector<2x8xf32>
    %81 = vector.multi_reduction <maximumf>, %80, %cst_27 [2] : vector<2x8x8xf32> to vector<2x8xf32>
    %82 = vector.shape_cast %81 : vector<2x8xf32> to vector<2x8x1xf32>
    %83 = vector.broadcast %82 : vector<2x8x1xf32> to vector<2x8x8xf32>
    %84 = arith.subf %80, %83 : vector<2x8x8xf32>
    %85 = math.exp %84 : vector<2x8x8xf32>
    %cst_28 = arith.constant dense<0.000000e+00> : vector<2x8xf32>
    %86 = vector.multi_reduction <add>, %85, %cst_28 [2] : vector<2x8x8xf32> to vector<2x8xf32>
    %87 = vector.shape_cast %86 : vector<2x8xf32> to vector<2x8x1xf32>
    %88 = tpu.reciprocal %87 {approx = true} : vector<2x8x1xf32> -> vector<2x8x1xf32>
    %89 = vector.broadcast %88 : vector<2x8x1xf32> to vector<2x8x8xf32>
    %90 = arith.mulf %85, %89 : vector<2x8x8xf32>
    %91 = arith.truncf %90 : vector<2x8x8xf32> to vector<2x8x8xbf16>
    %92 = arith.truncf %72 : vector<2x8x8xf32> to vector<2x8x8xbf16>
    "tpu.trace_start"() <{level = 10 : i32, message = "nqk,nke->nqe"}> : () -> ()
    %cst_29 = arith.constant dense<0.000000e+00> : vector<2x8x8xf32>
    %93 = tpu.matmul %91, %92, %cst_29 {dimension_numbers = #tpu.dot_dimension_numbers<[2], [1], [1], [2], [0, 0, 0, 1, 1, 2], [0], [0]>} : vector<2x8x8xbf16>, vector<2x8x8xbf16>, vector<2x8x8xf32> -> vector<2x8x8xf32>
    "tpu.trace_stop"() : () -> ()
    %94 = vector.shape_cast %93 : vector<2x8x8xf32> to vector<16x8xf32>
    %95 = vector.extract_strided_slice %38 {offsets = [0, 16], sizes = [16, 8], strides = [1, 1]} : vector<16x96xf32> to vector<16x8xf32>
    %96 = vector.shape_cast %95 : vector<16x8xf32> to vector<2x8x8xf32>
    %97 = vector.extract_strided_slice %38 {offsets = [0, 48], sizes = [16, 8], strides = [1, 1]} : vector<16x96xf32> to vector<16x8xf32>
    %98 = vector.shape_cast %97 : vector<16x8xf32> to vector<2x8x8xf32>
    %99 = vector.extract_strided_slice %38 {offsets = [0, 80], sizes = [16, 8], strides = [1, 1]} : vector<16x96xf32> to vector<16x8xf32>
    %100 = vector.shape_cast %99 : vector<16x8xf32> to vector<2x8x8xf32>
    %101 = arith.truncf %96 : vector<2x8x8xf32> to vector<2x8x8xbf16>
    %102 = arith.truncf %98 : vector<2x8x8xf32> to vector<2x8x8xbf16>
    "tpu.trace_start"() <{level = 10 : i32, message = "nqe,nke->nqk"}> : () -> ()
    %cst_30 = arith.constant dense<0.000000e+00> : vector<2x8x8xf32>
    %103 = tpu.matmul %101, %102, %cst_30 {dimension_numbers = #tpu.dot_dimension_numbers<[2], [2], [1], [1], [0, 0, 0, 1, 1, 1], [0], [0]>} : vector<2x8x8xbf16>, vector<2x8x8xbf16>, vector<2x8x8xf32> -> vector<2x8x8xf32>
    "tpu.trace_stop"() : () -> ()
    %cst_31 = arith.constant 0.353553385 : f32
    %104 = vector.broadcast %cst_31 : f32 to vector<2x8x8xf32>
    %105 = arith.mulf %103, %104 : vector<2x8x8xf32>
    %106 = vector.shape_cast %6 : vector<8x8xf32> to vector<1x8x8xf32>
    %107 = vector.broadcast %106 : vector<1x8x8xf32> to vector<2x8x8xf32>
    %108 = arith.addf %105, %107 : vector<2x8x8xf32>
    %cst_32 = arith.constant dense<0xFF800000> : vector<2x8xf32>
    %109 = vector.multi_reduction <maximumf>, %108, %cst_32 [2] : vector<2x8x8xf32> to vector<2x8xf32>
    %110 = vector.shape_cast %109 : vector<2x8xf32> to vector<2x8x1xf32>
    %111 = vector.broadcast %110 : vector<2x8x1xf32> to vector<2x8x8xf32>
    %112 = arith.subf %108, %111 : vector<2x8x8xf32>
    %113 = math.exp %112 : vector<2x8x8xf32>
    %cst_33 = arith.constant dense<0.000000e+00> : vector<2x8xf32>
    %114 = vector.multi_reduction <add>, %113, %cst_33 [2] : vector<2x8x8xf32> to vector<2x8xf32>
    %115 = vector.shape_cast %114 : vector<2x8xf32> to vector<2x8x1xf32>
    %116 = tpu.reciprocal %115 {approx = true} : vector<2x8x1xf32> -> vector<2x8x1xf32>
    %117 = vector.broadcast %116 : vector<2x8x1xf32> to vector<2x8x8xf32>
    %118 = arith.mulf %113, %117 : vector<2x8x8xf32>
    %119 = arith.truncf %118 : vector<2x8x8xf32> to vector<2x8x8xbf16>
    %120 = arith.truncf %100 : vector<2x8x8xf32> to vector<2x8x8xbf16>
    "tpu.trace_start"() <{level = 10 : i32, message = "nqk,nke->nqe"}> : () -> ()
    %cst_34 = arith.constant dense<0.000000e+00> : vector<2x8x8xf32>
    %121 = tpu.matmul %119, %120, %cst_34 {dimension_numbers = #tpu.dot_dimension_numbers<[2], [1], [1], [2], [0, 0, 0, 1, 1, 2], [0], [0]>} : vector<2x8x8xbf16>, vector<2x8x8xbf16>, vector<2x8x8xf32> -> vector<2x8x8xf32>
    "tpu.trace_stop"() : () -> ()
    %122 = vector.shape_cast %121 : vector<2x8x8xf32> to vector<16x8xf32>
    %123 = vector.extract_strided_slice %38 {offsets = [0, 24], sizes = [16, 8], strides = [1, 1]} : vector<16x96xf32> to vector<16x8xf32>
    %124 = vector.shape_cast %123 : vector<16x8xf32> to vector<2x8x8xf32>
    %125 = vector.extract_strided_slice %38 {offsets = [0, 56], sizes = [16, 8], strides = [1, 1]} : vector<16x96xf32> to vector<16x8xf32>
    %126 = vector.shape_cast %125 : vector<16x8xf32> to vector<2x8x8xf32>
    %127 = vector.extract_strided_slice %38 {offsets = [0, 88], sizes = [16, 8], strides = [1, 1]} : vector<16x96xf32> to vector<16x8xf32>
    %128 = vector.shape_cast %127 : vector<16x8xf32> to vector<2x8x8xf32>
    %129 = arith.truncf %124 : vector<2x8x8xf32> to vector<2x8x8xbf16>
    %130 = arith.truncf %126 : vector<2x8x8xf32> to vector<2x8x8xbf16>
    "tpu.trace_start"() <{level = 10 : i32, message = "nqe,nke->nqk"}> : () -> ()
    %cst_35 = arith.constant dense<0.000000e+00> : vector<2x8x8xf32>
    %131 = tpu.matmul %129, %130, %cst_35 {dimension_numbers = #tpu.dot_dimension_numbers<[2], [2], [1], [1], [0, 0, 0, 1, 1, 1], [0], [0]>} : vector<2x8x8xbf16>, vector<2x8x8xbf16>, vector<2x8x8xf32> -> vector<2x8x8xf32>
    "tpu.trace_stop"() : () -> ()
    %cst_36 = arith.constant 0.353553385 : f32
    %132 = vector.broadcast %cst_36 : f32 to vector<2x8x8xf32>
    %133 = arith.mulf %131, %132 : vector<2x8x8xf32>
    %134 = vector.shape_cast %6 : vector<8x8xf32> to vector<1x8x8xf32>
    %135 = vector.broadcast %134 : vector<1x8x8xf32> to vector<2x8x8xf32>
    %136 = arith.addf %133, %135 : vector<2x8x8xf32>
    %cst_37 = arith.constant dense<0xFF800000> : vector<2x8xf32>
    %137 = vector.multi_reduction <maximumf>, %136, %cst_37 [2] : vector<2x8x8xf32> to vector<2x8xf32>
    %138 = vector.shape_cast %137 : vector<2x8xf32> to vector<2x8x1xf32>
    %139 = vector.broadcast %138 : vector<2x8x1xf32> to vector<2x8x8xf32>
    %140 = arith.subf %136, %139 : vector<2x8x8xf32>
    %141 = math.exp %140 : vector<2x8x8xf32>
    %cst_38 = arith.constant dense<0.000000e+00> : vector<2x8xf32>
    %142 = vector.multi_reduction <add>, %141, %cst_38 [2] : vector<2x8x8xf32> to vector<2x8xf32>
    %143 = vector.shape_cast %142 : vector<2x8xf32> to vector<2x8x1xf32>
    %144 = tpu.reciprocal %143 {approx = true} : vector<2x8x1xf32> -> vector<2x8x1xf32>
    %145 = vector.broadcast %144 : vector<2x8x1xf32> to vector<2x8x8xf32>
    %146 = arith.mulf %141, %145 : vector<2x8x8xf32>
    %147 = arith.truncf %146 : vector<2x8x8xf32> to vector<2x8x8xbf16>
    %148 = arith.truncf %128 : vector<2x8x8xf32> to vector<2x8x8xbf16>
    "tpu.trace_start"() <{level = 10 : i32, message = "nqk,nke->nqe"}> : () -> ()
    %cst_39 = arith.constant dense<0.000000e+00> : vector<2x8x8xf32>
    %149 = tpu.matmul %147, %148, %cst_39 {dimension_numbers = #tpu.dot_dimension_numbers<[2], [1], [1], [2], [0, 0, 0, 1, 1, 2], [0], [0]>} : vector<2x8x8xbf16>, vector<2x8x8xbf16>, vector<2x8x8xf32> -> vector<2x8x8xf32>
    "tpu.trace_stop"() : () -> ()
    %150 = vector.shape_cast %149 : vector<2x8x8xf32> to vector<16x8xf32>
    %151 = tpu.concatenate %66, %94, %122, %150 in 1 : vector<16x8xf32>, vector<16x8xf32>, vector<16x8xf32>, vector<16x8xf32> -> vector<16x32xf32>
    %152 = arith.truncf %151 : vector<16x32xf32> to vector<16x32xbf16>
    %c0_40 = arith.constant 0 : index
    %c0_41 = arith.constant 0 : index
    %c0_42 = arith.constant 0 : index
    %153 = vector.load %arg10[%c0_40, %c0_41, %c0_42] : memref<2x32x32xbf16, #tpu.memory_space<vmem>>, vector<1x32x32xbf16>
    %154 = vector.shape_cast %153 : vector<1x32x32xbf16> to vector<32x32xbf16>
    %cst_43 = arith.constant dense<0.000000e+00> : vector<16x32xf32>
    %155 = tpu.matmul %152, %154, %cst_43 {dimension_numbers = #tpu.dot_dimension_numbers<[1], [0], [0], [1], [0, 0, 1, 1], [], []>} : vector<16x32xbf16>, vector<32x32xbf16>, vector<16x32xf32> -> vector<16x32xf32>
    %156 = arith.addf %0, %155 : vector<16x32xf32>
    %c0_44 = arith.constant 0 : index
    %c0_45 = arith.constant 0 : index
    %c0_46 = arith.constant 0 : index
    %157 = vector.load %arg11[%c0_44, %c0_45, %c0_46] : memref<2x1x32xf32, #tpu.memory_space<vmem>>, vector<1x1x32xf32>
    %158 = vector.shape_cast %157 : vector<1x1x32xf32> to vector<1x32xf32>
    %159 = vector.broadcast %158 : vector<1x32xf32> to vector<16x32xf32>
    %160 = arith.addf %156, %159 : vector<16x32xf32>
    %c0_47 = arith.constant 0 : index
    %c0_48 = arith.constant 0 : index
    %c0_49 = arith.constant 0 : index
    %161 = vector.load %arg12[%c0_47, %c0_48, %c0_49] : memref<2x1x32xf32, #tpu.memory_space<vmem>>, vector<1x1x32xf32>
    %162 = vector.shape_cast %161 : vector<1x1x32xf32> to vector<1x32xf32>
    %c0_50 = arith.constant 0 : index
    %c0_51 = arith.constant 0 : index
    %c0_52 = arith.constant 0 : index
    %163 = vector.load %arg13[%c0_50, %c0_51, %c0_52] : memref<2x1x32xf32, #tpu.memory_space<vmem>>, vector<1x1x32xf32>
    %164 = vector.shape_cast %163 : vector<1x1x32xf32> to vector<1x32xf32>
    %cst_53 = arith.constant dense<0.000000e+00> : vector<16xf32>
    %165 = vector.multi_reduction <add>, %160, %cst_53 [1] : vector<16x32xf32> to vector<16xf32>
    %166 = vector.shape_cast %165 : vector<16xf32> to vector<16x1xf32>
    %cst_54 = arith.constant 3.200000e+01 : f32
    %167 = vector.broadcast %cst_54 : f32 to vector<16x1xf32>
    %168 = arith.divf %166, %167 : vector<16x1xf32>
    %169 = vector.broadcast %168 : vector<16x1xf32> to vector<16x32xf32>
    %170 = arith.subf %160, %169 : vector<16x32xf32>
    %171 = arith.mulf %170, %170 : vector<16x32xf32>
    %cst_55 = arith.constant dense<0.000000e+00> : vector<16xf32>
    %172 = vector.multi_reduction <add>, %171, %cst_55 [1] : vector<16x32xf32> to vector<16xf32>
    %173 = vector.shape_cast %172 : vector<16xf32> to vector<16x1xf32>
    %cst_56 = arith.constant 3.200000e+01 : f32
    %174 = vector.broadcast %cst_56 : f32 to vector<16x1xf32>
    %175 = arith.divf %173, %174 : vector<16x1xf32>
    %cst_57 = arith.constant 9.99999974E-6 : f32
    %176 = vector.broadcast %cst_57 : f32 to vector<16x1xf32>
    %177 = arith.addf %175, %176 : vector<16x1xf32>
    %178 = math.rsqrt %177 : vector<16x1xf32>
    %179 = vector.broadcast %178 : vector<16x1xf32> to vector<16x32xf32>
    %180 = arith.mulf %170, %179 : vector<16x32xf32>
    %181 = vector.broadcast %162 : vector<1x32xf32> to vector<16x32xf32>
    %182 = arith.mulf %180, %181 : vector<16x32xf32>
    %183 = vector.broadcast %164 : vector<1x32xf32> to vector<16x32xf32>
    %184 = arith.addf %182, %183 : vector<16x32xf32>
    %185 = arith.truncf %184 : vector<16x32xf32> to vector<16x32xbf16>
    %c0_58 = arith.constant 0 : index
    %c0_59 = arith.constant 0 : index
    %c0_60 = arith.constant 0 : index
    %186 = vector.load %arg14[%c0_58, %c0_59, %c0_60] : memref<2x32x128xbf16, #tpu.memory_space<vmem>>, vector<1x32x128xbf16>
    %187 = vector.shape_cast %186 : vector<1x32x128xbf16> to vector<32x128xbf16>
    %cst_61 = arith.constant dense<0.000000e+00> : vector<16x128xf32>
    %188 = tpu.matmul %185, %187, %cst_61 {dimension_numbers = #tpu.dot_dimension_numbers<[1], [0], [0], [1], [0, 0, 1, 1], [], []>} : vector<16x32xbf16>, vector<32x128xbf16>, vector<16x128xf32> -> vector<16x128xf32>
    %c0_62 = arith.constant 0 : index
    %c0_63 = arith.constant 0 : index
    %c0_64 = arith.constant 0 : index
    %189 = vector.load %arg15[%c0_62, %c0_63, %c0_64] : memref<2x1x128xf32, #tpu.memory_space<vmem>>, vector<1x1x128xf32>
    %190 = vector.shape_cast %189 : vector<1x1x128xf32> to vector<1x128xf32>
    %191 = vector.broadcast %190 : vector<1x128xf32> to vector<16x128xf32>
    %192 = arith.addf %188, %191 : vector<16x128xf32>
    %cst_65 = arith.constant 1.702000e+00 : f32
    %193 = vector.broadcast %cst_65 : f32 to vector<16x128xf32>
    %194 = arith.mulf %193, %192 : vector<16x128xf32>
    %195 = arith.negf %194 : vector<16x128xf32>
    %196 = math.exp %195 : vector<16x128xf32>
    %cst_66 = arith.constant 1.000000e+00 : f32
    %197 = vector.broadcast %cst_66 : f32 to vector<16x128xf32>
    %198 = arith.addf %197, %196 : vector<16x128xf32>
    %199 = arith.divf %197, %198 : vector<16x128xf32>
    %200 = arith.mulf %192, %199 : vector<16x128xf32>
    %201 = arith.truncf %200 : vector<16x128xf32> to vector<16x128xbf16>
    %c0_67 = arith.constant 0 : index
    %c0_68 = arith.constant 0 : index
    %c0_69 = arith.constant 0 : index
    %202 = vector.load %arg16[%c0_67, %c0_68, %c0_69] : memref<2x128x32xbf16, #tpu.memory_space<vmem>>, vector<1x128x32xbf16>
    %203 = vector.shape_cast %202 : vector<1x128x32xbf16> to vector<128x32xbf16>
    %cst_70 = arith.constant dense<0.000000e+00> : vector<16x32xf32>
    %204 = tpu.matmul %201, %203, %cst_70 {dimension_numbers = #tpu.dot_dimension_numbers<[1], [0], [0], [1], [0, 0, 1, 1], [], []>} : vector<16x128xbf16>, vector<128x32xbf16>, vector<16x32xf32> -> vector<16x32xf32>
    %205 = arith.addf %160, %204 : vector<16x32xf32>
    %c0_71 = arith.constant 0 : index
    %c0_72 = arith.constant 0 : index
    %c0_73 = arith.constant 0 : index
    %206 = vector.load %arg17[%c0_71, %c0_72, %c0_73] : memref<2x1x32xf32, #tpu.memory_space<vmem>>, vector<1x1x32xf32>
    %207 = vector.shape_cast %206 : vector<1x1x32xf32> to vector<1x32xf32>
    %208 = vector.broadcast %207 : vector<1x32xf32> to vector<16x32xf32>
    %209 = arith.addf %205, %208 : vector<16x32xf32>
    %c1 = arith.constant 1 : index
    %c0_74 = arith.constant 0 : index
    %c0_75 = arith.constant 0 : index
    %210 = vector.load %arg6[%c1, %c0_74, %c0_75] : memref<2x1x32xf32, #tpu.memory_space<vmem>>, vector<1x1x32xf32>
    %211 = vector.shape_cast %210 : vector<1x1x32xf32> to vector<1x32xf32>
    %c1_76 = arith.constant 1 : index
    %c0_77 = arith.constant 0 : index
    %c0_78 = arith.constant 0 : index
    %212 = vector.load %arg7[%c1_76, %c0_77, %c0_78] : memref<2x1x32xf32, #tpu.memory_space<vmem>>, vector<1x1x32xf32>
    %213 = vector.shape_cast %212 : vector<1x1x32xf32> to vector<1x32xf32>
    %cst_79 = arith.constant dense<0.000000e+00> : vector<16xf32>
    %214 = vector.multi_reduction <add>, %209, %cst_79 [1] : vector<16x32xf32> to vector<16xf32>
    %215 = vector.shape_cast %214 : vector<16xf32> to vector<16x1xf32>
    %cst_80 = arith.constant 3.200000e+01 : f32
    %216 = vector.broadcast %cst_80 : f32 to vector<16x1xf32>
    %217 = arith.divf %215, %216 : vector<16x1xf32>
    %218 = vector.broadcast %217 : vector<16x1xf32> to vector<16x32xf32>
    %219 = arith.subf %209, %218 : vector<16x32xf32>
    %220 = arith.mulf %219, %219 : vector<16x32xf32>
    %cst_81 = arith.constant dense<0.000000e+00> : vector<16xf32>
    %221 = vector.multi_reduction <add>, %220, %cst_81 [1] : vector<16x32xf32> to vector<16xf32>
    %222 = vector.shape_cast %221 : vector<16xf32> to vector<16x1xf32>
    %cst_82 = arith.constant 3.200000e+01 : f32
    %223 = vector.broadcast %cst_82 : f32 to vector<16x1xf32>
    %224 = arith.divf %222, %223 : vector<16x1xf32>
    %cst_83 = arith.constant 9.99999974E-6 : f32
    %225 = vector.broadcast %cst_83 : f32 to vector<16x1xf32>
    %226 = arith.addf %224, %225 : vector<16x1xf32>
    %227 = math.rsqrt %226 : vector<16x1xf32>
    %228 = vector.broadcast %227 : vector<16x1xf32> to vector<16x32xf32>
    %229 = arith.mulf %219, %228 : vector<16x32xf32>
    %230 = vector.broadcast %211 : vector<1x32xf32> to vector<16x32xf32>
    %231 = arith.mulf %229, %230 : vector<16x32xf32>
    %232 = vector.broadcast %213 : vector<1x32xf32> to vector<16x32xf32>
    %233 = arith.addf %231, %232 : vector<16x32xf32>
    %234 = arith.truncf %233 : vector<16x32xf32> to vector<16x32xbf16>
    %c1_84 = arith.constant 1 : index
    %c0_85 = arith.constant 0 : index
    %c0_86 = arith.constant 0 : index
    %235 = vector.load %arg8[%c1_84, %c0_85, %c0_86] : memref<2x32x96xbf16, #tpu.memory_space<vmem>>, vector<1x32x96xbf16>
    %236 = vector.shape_cast %235 : vector<1x32x96xbf16> to vector<32x96xbf16>
    %cst_87 = arith.constant dense<0.000000e+00> : vector<16x96xf32>
    %237 = tpu.matmul %234, %236, %cst_87 {dimension_numbers = #tpu.dot_dimension_numbers<[1], [0], [0], [1], [0, 0, 1, 1], [], []>} : vector<16x32xbf16>, vector<32x96xbf16>, vector<16x96xf32> -> vector<16x96xf32>
    %c1_88 = arith.constant 1 : index
    %c0_89 = arith.constant 0 : index
    %c0_90 = arith.constant 0 : index
    %238 = vector.load %arg9[%c1_88, %c0_89, %c0_90] : memref<2x1x96xf32, #tpu.memory_space<vmem>>, vector<1x1x96xf32>
    %239 = vector.shape_cast %238 : vector<1x1x96xf32> to vector<1x96xf32>
    %240 = vector.broadcast %239 : vector<1x96xf32> to vector<16x96xf32>
    %241 = arith.addf %237, %240 : vector<16x96xf32>
    %242 = vector.extract_strided_slice %241 {offsets = [0, 0], sizes = [16, 8], strides = [1, 1]} : vector<16x96xf32> to vector<16x8xf32>
    %243 = vector.shape_cast %242 : vector<16x8xf32> to vector<2x8x8xf32>
    %244 = vector.extract_strided_slice %241 {offsets = [0, 32], sizes = [16, 8], strides = [1, 1]} : vector<16x96xf32> to vector<16x8xf32>
    %245 = vector.shape_cast %244 : vector<16x8xf32> to vector<2x8x8xf32>
    %246 = vector.extract_strided_slice %241 {offsets = [0, 64], sizes = [16, 8], strides = [1, 1]} : vector<16x96xf32> to vector<16x8xf32>
    %247 = vector.shape_cast %246 : vector<16x8xf32> to vector<2x8x8xf32>
    %248 = arith.truncf %243 : vector<2x8x8xf32> to vector<2x8x8xbf16>
    %249 = arith.truncf %245 : vector<2x8x8xf32> to vector<2x8x8xbf16>
    "tpu.trace_start"() <{level = 10 : i32, message = "nqe,nke->nqk"}> : () -> ()
    %cst_91 = arith.constant dense<0.000000e+00> : vector<2x8x8xf32>
    %250 = tpu.matmul %248, %249, %cst_91 {dimension_numbers = #tpu.dot_dimension_numbers<[2], [2], [1], [1], [0, 0, 0, 1, 1, 1], [0], [0]>} : vector<2x8x8xbf16>, vector<2x8x8xbf16>, vector<2x8x8xf32> -> vector<2x8x8xf32>
    "tpu.trace_stop"() : () -> ()
    %cst_92 = arith.constant 0.353553385 : f32
    %251 = vector.broadcast %cst_92 : f32 to vector<2x8x8xf32>
    %252 = arith.mulf %250, %251 : vector<2x8x8xf32>
    %253 = vector.shape_cast %6 : vector<8x8xf32> to vector<1x8x8xf32>
    %254 = vector.broadcast %253 : vector<1x8x8xf32> to vector<2x8x8xf32>
    %255 = arith.addf %252, %254 : vector<2x8x8xf32>
    %cst_93 = arith.constant dense<0xFF800000> : vector<2x8xf32>
    %256 = vector.multi_reduction <maximumf>, %255, %cst_93 [2] : vector<2x8x8xf32> to vector<2x8xf32>
    %257 = vector.shape_cast %256 : vector<2x8xf32> to vector<2x8x1xf32>
    %258 = vector.broadcast %257 : vector<2x8x1xf32> to vector<2x8x8xf32>
    %259 = arith.subf %255, %258 : vector<2x8x8xf32>
    %260 = math.exp %259 : vector<2x8x8xf32>
    %cst_94 = arith.constant dense<0.000000e+00> : vector<2x8xf32>
    %261 = vector.multi_reduction <add>, %260, %cst_94 [2] : vector<2x8x8xf32> to vector<2x8xf32>
    %262 = vector.shape_cast %261 : vector<2x8xf32> to vector<2x8x1xf32>
    %263 = tpu.reciprocal %262 {approx = true} : vector<2x8x1xf32> -> vector<2x8x1xf32>
    %264 = vector.broadcast %263 : vector<2x8x1xf32> to vector<2x8x8xf32>
    %265 = arith.mulf %260, %264 : vector<2x8x8xf32>
    %266 = arith.truncf %265 : vector<2x8x8xf32> to vector<2x8x8xbf16>
    %267 = arith.truncf %247 : vector<2x8x8xf32> to vector<2x8x8xbf16>
    "tpu.trace_start"() <{level = 10 : i32, message = "nqk,nke->nqe"}> : () -> ()
    %cst_95 = arith.constant dense<0.000000e+00> : vector<2x8x8xf32>
    %268 = tpu.matmul %266, %267, %cst_95 {dimension_numbers = #tpu.dot_dimension_numbers<[2], [1], [1], [2], [0, 0, 0, 1, 1, 2], [0], [0]>} : vector<2x8x8xbf16>, vector<2x8x8xbf16>, vector<2x8x8xf32> -> vector<2x8x8xf32>
    "tpu.trace_stop"() : () -> ()
    %269 = vector.shape_cast %268 : vector<2x8x8xf32> to vector<16x8xf32>
    %270 = vector.extract_strided_slice %241 {offsets = [0, 8], sizes = [16, 8], strides = [1, 1]} : vector<16x96xf32> to vector<16x8xf32>
    %271 = vector.shape_cast %270 : vector<16x8xf32> to vector<2x8x8xf32>
    %272 = vector.extract_strided_slice %241 {offsets = [0, 40], sizes = [16, 8], strides = [1, 1]} : vector<16x96xf32> to vector<16x8xf32>
    %273 = vector.shape_cast %272 : vector<16x8xf32> to vector<2x8x8xf32>
    %274 = vector.extract_strided_slice %241 {offsets = [0, 72], sizes = [16, 8], strides = [1, 1]} : vector<16x96xf32> to vector<16x8xf32>
    %275 = vector.shape_cast %274 : vector<16x8xf32> to vector<2x8x8xf32>
    %276 = arith.truncf %271 : vector<2x8x8xf32> to vector<2x8x8xbf16>
    %277 = arith.truncf %273 : vector<2x8x8xf32> to vector<2x8x8xbf16>
    "tpu.trace_start"() <{level = 10 : i32, message = "nqe,nke->nqk"}> : () -> ()
    %cst_96 = arith.constant dense<0.000000e+00> : vector<2x8x8xf32>
    %278 = tpu.matmul %276, %277, %cst_96 {dimension_numbers = #tpu.dot_dimension_numbers<[2], [2], [1], [1], [0, 0, 0, 1, 1, 1], [0], [0]>} : vector<2x8x8xbf16>, vector<2x8x8xbf16>, vector<2x8x8xf32> -> vector<2x8x8xf32>
    "tpu.trace_stop"() : () -> ()
    %cst_97 = arith.constant 0.353553385 : f32
    %279 = vector.broadcast %cst_97 : f32 to vector<2x8x8xf32>
    %280 = arith.mulf %278, %279 : vector<2x8x8xf32>
    %281 = vector.shape_cast %6 : vector<8x8xf32> to vector<1x8x8xf32>
    %282 = vector.broadcast %281 : vector<1x8x8xf32> to vector<2x8x8xf32>
    %283 = arith.addf %280, %282 : vector<2x8x8xf32>
    %cst_98 = arith.constant dense<0xFF800000> : vector<2x8xf32>
    %284 = vector.multi_reduction <maximumf>, %283, %cst_98 [2] : vector<2x8x8xf32> to vector<2x8xf32>
    %285 = vector.shape_cast %284 : vector<2x8xf32> to vector<2x8x1xf32>
    %286 = vector.broadcast %285 : vector<2x8x1xf32> to vector<2x8x8xf32>
    %287 = arith.subf %283, %286 : vector<2x8x8xf32>
    %288 = math.exp %287 : vector<2x8x8xf32>
    %cst_99 = arith.constant dense<0.000000e+00> : vector<2x8xf32>
    %289 = vector.multi_reduction <add>, %288, %cst_99 [2] : vector<2x8x8xf32> to vector<2x8xf32>
    %290 = vector.shape_cast %289 : vector<2x8xf32> to vector<2x8x1xf32>
    %291 = tpu.reciprocal %290 {approx = true} : vector<2x8x1xf32> -> vector<2x8x1xf32>
    %292 = vector.broadcast %291 : vector<2x8x1xf32> to vector<2x8x8xf32>
    %293 = arith.mulf %288, %292 : vector<2x8x8xf32>
    %294 = arith.truncf %293 : vector<2x8x8xf32> to vector<2x8x8xbf16>
    %295 = arith.truncf %275 : vector<2x8x8xf32> to vector<2x8x8xbf16>
    "tpu.trace_start"() <{level = 10 : i32, message = "nqk,nke->nqe"}> : () -> ()
    %cst_100 = arith.constant dense<0.000000e+00> : vector<2x8x8xf32>
    %296 = tpu.matmul %294, %295, %cst_100 {dimension_numbers = #tpu.dot_dimension_numbers<[2], [1], [1], [2], [0, 0, 0, 1, 1, 2], [0], [0]>} : vector<2x8x8xbf16>, vector<2x8x8xbf16>, vector<2x8x8xf32> -> vector<2x8x8xf32>
    "tpu.trace_stop"() : () -> ()
    %297 = vector.shape_cast %296 : vector<2x8x8xf32> to vector<16x8xf32>
    %298 = vector.extract_strided_slice %241 {offsets = [0, 16], sizes = [16, 8], strides = [1, 1]} : vector<16x96xf32> to vector<16x8xf32>
    %299 = vector.shape_cast %298 : vector<16x8xf32> to vector<2x8x8xf32>
    %300 = vector.extract_strided_slice %241 {offsets = [0, 48], sizes = [16, 8], strides = [1, 1]} : vector<16x96xf32> to vector<16x8xf32>
    %301 = vector.shape_cast %300 : vector<16x8xf32> to vector<2x8x8xf32>
    %302 = vector.extract_strided_slice %241 {offsets = [0, 80], sizes = [16, 8], strides = [1, 1]} : vector<16x96xf32> to vector<16x8xf32>
    %303 = vector.shape_cast %302 : vector<16x8xf32> to vector<2x8x8xf32>
    %304 = arith.truncf %299 : vector<2x8x8xf32> to vector<2x8x8xbf16>
    %305 = arith.truncf %301 : vector<2x8x8xf32> to vector<2x8x8xbf16>
    "tpu.trace_start"() <{level = 10 : i32, message = "nqe,nke->nqk"}> : () -> ()
    %cst_101 = arith.constant dense<0.000000e+00> : vector<2x8x8xf32>
    %306 = tpu.matmul %304, %305, %cst_101 {dimension_numbers = #tpu.dot_dimension_numbers<[2], [2], [1], [1], [0, 0, 0, 1, 1, 1], [0], [0]>} : vector<2x8x8xbf16>, vector<2x8x8xbf16>, vector<2x8x8xf32> -> vector<2x8x8xf32>
    "tpu.trace_stop"() : () -> ()
    %cst_102 = arith.constant 0.353553385 : f32
    %307 = vector.broadcast %cst_102 : f32 to vector<2x8x8xf32>
    %308 = arith.mulf %306, %307 : vector<2x8x8xf32>
    %309 = vector.shape_cast %6 : vector<8x8xf32> to vector<1x8x8xf32>
    %310 = vector.broadcast %309 : vector<1x8x8xf32> to vector<2x8x8xf32>
    %311 = arith.addf %308, %310 : vector<2x8x8xf32>
    %cst_103 = arith.constant dense<0xFF800000> : vector<2x8xf32>
    %312 = vector.multi_reduction <maximumf>, %311, %cst_103 [2] : vector<2x8x8xf32> to vector<2x8xf32>
    %313 = vector.shape_cast %312 : vector<2x8xf32> to vector<2x8x1xf32>
    %314 = vector.broadcast %313 : vector<2x8x1xf32> to vector<2x8x8xf32>
    %315 = arith.subf %311, %314 : vector<2x8x8xf32>
    %316 = math.exp %315 : vector<2x8x8xf32>
    %cst_104 = arith.constant dense<0.000000e+00> : vector<2x8xf32>
    %317 = vector.multi_reduction <add>, %316, %cst_104 [2] : vector<2x8x8xf32> to vector<2x8xf32>
    %318 = vector.shape_cast %317 : vector<2x8xf32> to vector<2x8x1xf32>
    %319 = tpu.reciprocal %318 {approx = true} : vector<2x8x1xf32> -> vector<2x8x1xf32>
    %320 = vector.broadcast %319 : vector<2x8x1xf32> to vector<2x8x8xf32>
    %321 = arith.mulf %316, %320 : vector<2x8x8xf32>
    %322 = arith.truncf %321 : vector<2x8x8xf32> to vector<2x8x8xbf16>
    %323 = arith.truncf %303 : vector<2x8x8xf32> to vector<2x8x8xbf16>
    "tpu.trace_start"() <{level = 10 : i32, message = "nqk,nke->nqe"}> : () -> ()
    %cst_105 = arith.constant dense<0.000000e+00> : vector<2x8x8xf32>
    %324 = tpu.matmul %322, %323, %cst_105 {dimension_numbers = #tpu.dot_dimension_numbers<[2], [1], [1], [2], [0, 0, 0, 1, 1, 2], [0], [0]>} : vector<2x8x8xbf16>, vector<2x8x8xbf16>, vector<2x8x8xf32> -> vector<2x8x8xf32>
    "tpu.trace_stop"() : () -> ()
    %325 = vector.shape_cast %324 : vector<2x8x8xf32> to vector<16x8xf32>
    %326 = vector.extract_strided_slice %241 {offsets = [0, 24], sizes = [16, 8], strides = [1, 1]} : vector<16x96xf32> to vector<16x8xf32>
    %327 = vector.shape_cast %326 : vector<16x8xf32> to vector<2x8x8xf32>
    %328 = vector.extract_strided_slice %241 {offsets = [0, 56], sizes = [16, 8], strides = [1, 1]} : vector<16x96xf32> to vector<16x8xf32>
    %329 = vector.shape_cast %328 : vector<16x8xf32> to vector<2x8x8xf32>
    %330 = vector.extract_strided_slice %241 {offsets = [0, 88], sizes = [16, 8], strides = [1, 1]} : vector<16x96xf32> to vector<16x8xf32>
    %331 = vector.shape_cast %330 : vector<16x8xf32> to vector<2x8x8xf32>
    %332 = arith.truncf %327 : vector<2x8x8xf32> to vector<2x8x8xbf16>
    %333 = arith.truncf %329 : vector<2x8x8xf32> to vector<2x8x8xbf16>
    "tpu.trace_start"() <{level = 10 : i32, message = "nqe,nke->nqk"}> : () -> ()
    %cst_106 = arith.constant dense<0.000000e+00> : vector<2x8x8xf32>
    %334 = tpu.matmul %332, %333, %cst_106 {dimension_numbers = #tpu.dot_dimension_numbers<[2], [2], [1], [1], [0, 0, 0, 1, 1, 1], [0], [0]>} : vector<2x8x8xbf16>, vector<2x8x8xbf16>, vector<2x8x8xf32> -> vector<2x8x8xf32>
    "tpu.trace_stop"() : () -> ()
    %cst_107 = arith.constant 0.353553385 : f32
    %335 = vector.broadcast %cst_107 : f32 to vector<2x8x8xf32>
    %336 = arith.mulf %334, %335 : vector<2x8x8xf32>
    %337 = vector.shape_cast %6 : vector<8x8xf32> to vector<1x8x8xf32>
    %338 = vector.broadcast %337 : vector<1x8x8xf32> to vector<2x8x8xf32>
    %339 = arith.addf %336, %338 : vector<2x8x8xf32>
    %cst_108 = arith.constant dense<0xFF800000> : vector<2x8xf32>
    %340 = vector.multi_reduction <maximumf>, %339, %cst_108 [2] : vector<2x8x8xf32> to vector<2x8xf32>
    %341 = vector.shape_cast %340 : vector<2x8xf32> to vector<2x8x1xf32>
    %342 = vector.broadcast %341 : vector<2x8x1xf32> to vector<2x8x8xf32>
    %343 = arith.subf %339, %342 : vector<2x8x8xf32>
    %344 = math.exp %343 : vector<2x8x8xf32>
    %cst_109 = arith.constant dense<0.000000e+00> : vector<2x8xf32>
    %345 = vector.multi_reduction <add>, %344, %cst_109 [2] : vector<2x8x8xf32> to vector<2x8xf32>
    %346 = vector.shape_cast %345 : vector<2x8xf32> to vector<2x8x1xf32>
    %347 = tpu.reciprocal %346 {approx = true} : vector<2x8x1xf32> -> vector<2x8x1xf32>
    %348 = vector.broadcast %347 : vector<2x8x1xf32> to vector<2x8x8xf32>
    %349 = arith.mulf %344, %348 : vector<2x8x8xf32>
    %350 = arith.truncf %349 : vector<2x8x8xf32> to vector<2x8x8xbf16>
    %351 = arith.truncf %331 : vector<2x8x8xf32> to vector<2x8x8xbf16>
    "tpu.trace_start"() <{level = 10 : i32, message = "nqk,nke->nqe"}> : () -> ()
    %cst_110 = arith.constant dense<0.000000e+00> : vector<2x8x8xf32>
    %352 = tpu.matmul %350, %351, %cst_110 {dimension_numbers = #tpu.dot_dimension_numbers<[2], [1], [1], [2], [0, 0, 0, 1, 1, 2], [0], [0]>} : vector<2x8x8xbf16>, vector<2x8x8xbf16>, vector<2x8x8xf32> -> vector<2x8x8xf32>
    "tpu.trace_stop"() : () -> ()
    %353 = vector.shape_cast %352 : vector<2x8x8xf32> to vector<16x8xf32>
    %354 = tpu.concatenate %269, %297, %325, %353 in 1 : vector<16x8xf32>, vector<16x8xf32>, vector<16x8xf32>, vector<16x8xf32> -> vector<16x32xf32>
    %355 = arith.truncf %354 : vector<16x32xf32> to vector<16x32xbf16>
    %c1_111 = arith.constant 1 : index
    %c0_112 = arith.constant 0 : index
    %c0_113 = arith.constant 0 : index
    %356 = vector.load %arg10[%c1_111, %c0_112, %c0_113] : memref<2x32x32xbf16, #tpu.memory_space<vmem>>, vector<1x32x32xbf16>
    %357 = vector.shape_cast %356 : vector<1x32x32xbf16> to vector<32x32xbf16>
    %cst_114 = arith.constant dense<0.000000e+00> : vector<16x32xf32>
    %358 = tpu.matmul %355, %357, %cst_114 {dimension_numbers = #tpu.dot_dimension_numbers<[1], [0], [0], [1], [0, 0, 1, 1], [], []>} : vector<16x32xbf16>, vector<32x32xbf16>, vector<16x32xf32> -> vector<16x32xf32>
    %359 = arith.addf %209, %358 : vector<16x32xf32>
    %c1_115 = arith.constant 1 : index
    %c0_116 = arith.constant 0 : index
    %c0_117 = arith.constant 0 : index
    %360 = vector.load %arg11[%c1_115, %c0_116, %c0_117] : memref<2x1x32xf32, #tpu.memory_space<vmem>>, vector<1x1x32xf32>
    %361 = vector.shape_cast %360 : vector<1x1x32xf32> to vector<1x32xf32>
    %362 = vector.broadcast %361 : vector<1x32xf32> to vector<16x32xf32>
    %363 = arith.addf %359, %362 : vector<16x32xf32>
    %c1_118 = arith.constant 1 : index
    %c0_119 = arith.constant 0 : index
    %c0_120 = arith.constant 0 : index
    %364 = vector.load %arg12[%c1_118, %c0_119, %c0_120] : memref<2x1x32xf32, #tpu.memory_space<vmem>>, vector<1x1x32xf32>
    %365 = vector.shape_cast %364 : vector<1x1x32xf32> to vector<1x32xf32>
    %c1_121 = arith.constant 1 : index
    %c0_122 = arith.constant 0 : index
    %c0_123 = arith.constant 0 : index
    %366 = vector.load %arg13[%c1_121, %c0_122, %c0_123] : memref<2x1x32xf32, #tpu.memory_space<vmem>>, vector<1x1x32xf32>
    %367 = vector.shape_cast %366 : vector<1x1x32xf32> to vector<1x32xf32>
    %cst_124 = arith.constant dense<0.000000e+00> : vector<16xf32>
    %368 = vector.multi_reduction <add>, %363, %cst_124 [1] : vector<16x32xf32> to vector<16xf32>
    %369 = vector.shape_cast %368 : vector<16xf32> to vector<16x1xf32>
    %cst_125 = arith.constant 3.200000e+01 : f32
    %370 = vector.broadcast %cst_125 : f32 to vector<16x1xf32>
    %371 = arith.divf %369, %370 : vector<16x1xf32>
    %372 = vector.broadcast %371 : vector<16x1xf32> to vector<16x32xf32>
    %373 = arith.subf %363, %372 : vector<16x32xf32>
    %374 = arith.mulf %373, %373 : vector<16x32xf32>
    %cst_126 = arith.constant dense<0.000000e+00> : vector<16xf32>
    %375 = vector.multi_reduction <add>, %374, %cst_126 [1] : vector<16x32xf32> to vector<16xf32>
    %376 = vector.shape_cast %375 : vector<16xf32> to vector<16x1xf32>
    %cst_127 = arith.constant 3.200000e+01 : f32
    %377 = vector.broadcast %cst_127 : f32 to vector<16x1xf32>
    %378 = arith.divf %376, %377 : vector<16x1xf32>
    %cst_128 = arith.constant 9.99999974E-6 : f32
    %379 = vector.broadcast %cst_128 : f32 to vector<16x1xf32>
    %380 = arith.addf %378, %379 : vector<16x1xf32>
    %381 = math.rsqrt %380 : vector<16x1xf32>
    %382 = vector.broadcast %381 : vector<16x1xf32> to vector<16x32xf32>
    %383 = arith.mulf %373, %382 : vector<16x32xf32>
    %384 = vector.broadcast %365 : vector<1x32xf32> to vector<16x32xf32>
    %385 = arith.mulf %383, %384 : vector<16x32xf32>
    %386 = vector.broadcast %367 : vector<1x32xf32> to vector<16x32xf32>
    %387 = arith.addf %385, %386 : vector<16x32xf32>
    %388 = arith.truncf %387 : vector<16x32xf32> to vector<16x32xbf16>
    %c1_129 = arith.constant 1 : index
    %c0_130 = arith.constant 0 : index
    %c0_131 = arith.constant 0 : index
    %389 = vector.load %arg14[%c1_129, %c0_130, %c0_131] : memref<2x32x128xbf16, #tpu.memory_space<vmem>>, vector<1x32x128xbf16>
    %390 = vector.shape_cast %389 : vector<1x32x128xbf16> to vector<32x128xbf16>
    %cst_132 = arith.constant dense<0.000000e+00> : vector<16x128xf32>
    %391 = tpu.matmul %388, %390, %cst_132 {dimension_numbers = #tpu.dot_dimension_numbers<[1], [0], [0], [1], [0, 0, 1, 1], [], []>} : vector<16x32xbf16>, vector<32x128xbf16>, vector<16x128xf32> -> vector<16x128xf32>
    %c1_133 = arith.constant 1 : index
    %c0_134 = arith.constant 0 : index
    %c0_135 = arith.constant 0 : index
    %392 = vector.load %arg15[%c1_133, %c0_134, %c0_135] : memref<2x1x128xf32, #tpu.memory_space<vmem>>, vector<1x1x128xf32>
    %393 = vector.shape_cast %392 : vector<1x1x128xf32> to vector<1x128xf32>
    %394 = vector.broadcast %393 : vector<1x128xf32> to vector<16x128xf32>
    %395 = arith.addf %391, %394 : vector<16x128xf32>
    %cst_136 = arith.constant 1.702000e+00 : f32
    %396 = vector.broadcast %cst_136 : f32 to vector<16x128xf32>
    %397 = arith.mulf %396, %395 : vector<16x128xf32>
    %398 = arith.negf %397 : vector<16x128xf32>
    %399 = math.exp %398 : vector<16x128xf32>
    %cst_137 = arith.constant 1.000000e+00 : f32
    %400 = vector.broadcast %cst_137 : f32 to vector<16x128xf32>
    %401 = arith.addf %400, %399 : vector<16x128xf32>
    %402 = arith.divf %400, %401 : vector<16x128xf32>
    %403 = arith.mulf %395, %402 : vector<16x128xf32>
    %404 = arith.truncf %403 : vector<16x128xf32> to vector<16x128xbf16>
    %c1_138 = arith.constant 1 : index
    %c0_139 = arith.constant 0 : index
    %c0_140 = arith.constant 0 : index
    %405 = vector.load %arg16[%c1_138, %c0_139, %c0_140] : memref<2x128x32xbf16, #tpu.memory_space<vmem>>, vector<1x128x32xbf16>
    %406 = vector.shape_cast %405 : vector<1x128x32xbf16> to vector<128x32xbf16>
    %cst_141 = arith.constant dense<0.000000e+00> : vector<16x32xf32>
    %407 = tpu.matmul %404, %406, %cst_141 {dimension_numbers = #tpu.dot_dimension_numbers<[1], [0], [0], [1], [0, 0, 1, 1], [], []>} : vector<16x128xbf16>, vector<128x32xbf16>, vector<16x32xf32> -> vector<16x32xf32>
    %408 = arith.addf %363, %407 : vector<16x32xf32>
    %c1_142 = arith.constant 1 : index
    %c0_143 = arith.constant 0 : index
    %c0_144 = arith.constant 0 : index
    %409 = vector.load %arg17[%c1_142, %c0_143, %c0_144] : memref<2x1x32xf32, #tpu.memory_space<vmem>>, vector<1x1x32xf32>
    %410 = vector.shape_cast %409 : vector<1x1x32xf32> to vector<1x32xf32>
    %411 = vector.broadcast %410 : vector<1x32xf32> to vector<16x32xf32>
    %412 = arith.addf %408, %411 : vector<16x32xf32>
    %c0_145 = arith.constant 0 : index
    %c0_146 = arith.constant 0 : index
    %413 = vector.load %arg18[%c0_145, %c0_146] : memref<1x32xf32, #tpu.memory_space<vmem>>, vector<1x32xf32>
    %c0_147 = arith.constant 0 : index
    %c0_148 = arith.constant 0 : index
    %414 = vector.load %arg19[%c0_147, %c0_148] : memref<1x32xf32, #tpu.memory_space<vmem>>, vector<1x32xf32>
    %cst_149 = arith.constant dense<0.000000e+00> : vector<16xf32>
    %415 = vector.multi_reduction <add>, %412, %cst_149 [1] : vector<16x32xf32> to vector<16xf32>
    %416 = vector.shape_cast %415 : vector<16xf32> to vector<16x1xf32>
    %cst_150 = arith.constant 3.200000e+01 : f32
    %417 = vector.broadcast %cst_150 : f32 to vector<16x1xf32>
    %418 = arith.divf %416, %417 : vector<16x1xf32>
    %419 = vector.broadcast %418 : vector<16x1xf32> to vector<16x32xf32>
    %420 = arith.subf %412, %419 : vector<16x32xf32>
    %421 = arith.mulf %420, %420 : vector<16x32xf32>
    %cst_151 = arith.constant dense<0.000000e+00> : vector<16xf32>
    %422 = vector.multi_reduction <add>, %421, %cst_151 [1] : vector<16x32xf32> to vector<16xf32>
    %423 = vector.shape_cast %422 : vector<16xf32> to vector<16x1xf32>
    %cst_152 = arith.constant 3.200000e+01 : f32
    %424 = vector.broadcast %cst_152 : f32 to vector<16x1xf32>
    %425 = arith.divf %423, %424 : vector<16x1xf32>
    %cst_153 = arith.constant 9.99999974E-6 : f32
    %426 = vector.broadcast %cst_153 : f32 to vector<16x1xf32>
    %427 = arith.addf %425, %426 : vector<16x1xf32>
    %428 = math.rsqrt %427 : vector<16x1xf32>
    %429 = vector.broadcast %428 : vector<16x1xf32> to vector<16x32xf32>
    %430 = arith.mulf %420, %429 : vector<16x32xf32>
    %431 = vector.broadcast %413 : vector<1x32xf32> to vector<16x32xf32>
    %432 = arith.mulf %430, %431 : vector<16x32xf32>
    %433 = vector.broadcast %414 : vector<1x32xf32> to vector<16x32xf32>
    %434 = arith.addf %432, %433 : vector<16x32xf32>
    %c0_154 = arith.constant 0 : index
    %c0_155 = arith.constant 0 : index
    %435 = vector.load %arg5[%c0_154, %c0_155] : memref<2x16xf32, #tpu.memory_space<vmem>>, vector<2x16xf32>
    %cst_156 = arith.constant dense<0.000000e+00> : vector<2x32xf32>
    %436 = tpu.matmul %435, %434, %cst_156 {dimension_numbers = #tpu.dot_dimension_numbers<[1], [0], [0], [1], [0, 0, 1, 1], [], []>} : vector<2x16xf32>, vector<16x32xf32>, vector<2x32xf32> -> vector<2x32xf32>
    %437 = arith.truncf %436 : vector<2x32xf32> to vector<2x32xbf16>
    %c0_157 = arith.constant 0 : index
    %c0_158 = arith.constant 0 : index
    %438 = vector.load %arg20[%c0_157, %c0_158] : memref<32x32xbf16, #tpu.memory_space<vmem>>, vector<32x32xbf16>
    %cst_159 = arith.constant dense<0.000000e+00> : vector<2x32xf32>
    %439 = tpu.matmul %437, %438, %cst_159 {dimension_numbers = #tpu.dot_dimension_numbers<[1], [0], [0], [1], [0, 0, 1, 1], [], []>} : vector<2x32xbf16>, vector<32x32xbf16>, vector<2x32xf32> -> vector<2x32xf32>
    %440 = arith.mulf %439, %439 : vector<2x32xf32>
    %cst_160 = arith.constant dense<0.000000e+00> : vector<2xf32>
    %441 = vector.multi_reduction <add>, %440, %cst_160 [1] : vector<2x32xf32> to vector<2xf32>
    %442 = vector.shape_cast %441 : vector<2xf32> to vector<2x1xf32>
    %443 = math.rsqrt %442 : vector<2x1xf32>
    %444 = vector.broadcast %443 : vector<2x1xf32> to vector<2x32xf32>
    %445 = arith.mulf %439, %444 : vector<2x32xf32>
    %c0_161 = arith.constant 0 : index
    %c0_162 = arith.constant 0 : index
    %446 = vector.load %arg0[%c0_161, %c0_162] : memref<32x32xf32, #tpu.memory_space<vmem>>, vector<32x32xf32>
    %447 = arith.truncf %446 : vector<32x32xf32> to vector<32x32xbf16>
    %c0_163 = arith.constant 0 : index
    %c0_164 = arith.constant 0 : index
    %448 = vector.load %arg1[%c0_163, %c0_164] : memref<32x8xbf16, #tpu.memory_space<vmem>>, vector<32x8xbf16>
    %cst_165 = arith.constant dense<0.000000e+00> : vector<32x8xf32>
    %449 = tpu.matmul %447, %448, %cst_165 {dimension_numbers = #tpu.dot_dimension_numbers<[1], [0], [0], [1], [0, 0, 1, 1], [], []>} : vector<32x32xbf16>, vector<32x8xbf16>, vector<32x8xf32> -> vector<32x8xf32>
    %cst_166 = arith.constant 0.000000e+00 : f32
    %450 = vector.broadcast %cst_166 : f32 to vector<32x8xf32>
    %451 = arith.maximumf %449, %450 : vector<32x8xf32>
    %452 = arith.truncf %451 : vector<32x8xf32> to vector<32x8xbf16>
    %c0_167 = arith.constant 0 : index
    %c0_168 = arith.constant 0 : index
    %453 = vector.load %arg2[%c0_167, %c0_168] : memref<8x32xbf16, #tpu.memory_space<vmem>>, vector<8x32xbf16>
    %cst_169 = arith.constant dense<0.000000e+00> : vector<32x32xf32>
    %454 = tpu.matmul %452, %453, %cst_169 {dimension_numbers = #tpu.dot_dimension_numbers<[1], [0], [0], [1], [0, 0, 1, 1], [], []>} : vector<32x8xbf16>, vector<8x32xbf16>, vector<32x32xf32> -> vector<32x32xf32>
    %cst_170 = arith.constant 0.000000e+00 : f32
    %455 = vector.broadcast %cst_170 : f32 to vector<32x32xf32>
    %456 = arith.maximumf %454, %455 : vector<32x32xf32>
    %cst_171 = arith.constant 4.000000e-01 : f32
    %457 = vector.broadcast %cst_171 : f32 to vector<32x32xf32>
    %458 = arith.mulf %457, %456 : vector<32x32xf32>
    %cst_172 = arith.constant 6.000000e-01 : f32
    %459 = vector.broadcast %cst_172 : f32 to vector<32x32xf32>
    %460 = arith.mulf %459, %446 : vector<32x32xf32>
    %461 = arith.addf %458, %460 : vector<32x32xf32>
    %462 = arith.mulf %461, %461 : vector<32x32xf32>
    %cst_173 = arith.constant dense<0.000000e+00> : vector<32xf32>
    %463 = vector.multi_reduction <add>, %462, %cst_173 [1] : vector<32x32xf32> to vector<32xf32>
    %464 = vector.shape_cast %463 : vector<32xf32> to vector<32x1xf32>
    %465 = math.rsqrt %464 : vector<32x1xf32>
    %466 = vector.broadcast %465 : vector<32x1xf32> to vector<32x32xf32>
    %467 = arith.mulf %461, %466 : vector<32x32xf32>
    %c0_174 = arith.constant 0 : index
    %c0_175 = arith.constant 0 : index
    %468 = vector.load %arg3[%c0_174, %c0_175] : memref<1x1xf32, #tpu.memory_space<vmem>>, vector<1x1xf32>
    %469 = math.exp %468 : vector<1x1xf32>
    %470 = arith.truncf %445 : vector<2x32xf32> to vector<2x32xbf16>
    %471 = arith.truncf %467 : vector<32x32xf32> to vector<32x32xbf16>
    %cst_176 = arith.constant dense<0.000000e+00> : vector<2x32xf32>
    %472 = tpu.matmul %470, %471, %cst_176 {dimension_numbers = #tpu.dot_dimension_numbers<[1], [1], [0], [0], [0, 0, 1, 0], [], []>} : vector<2x32xbf16>, vector<32x32xbf16>, vector<2x32xf32> -> vector<2x32xf32>
    %473 = vector.broadcast %469 : vector<1x1xf32> to vector<2x32xf32>
    %474 = arith.mulf %473, %472 : vector<2x32xf32>
    %c0_177 = arith.constant 0 : index
    %c0_178 = arith.constant 0 : index
    %475 = vector.load %arg21[%c0_177, %c0_178] : memref<2x32xf32, #tpu.memory_space<vmem>>, vector<2x32xf32>
    tpu.vector_store %arg21[%c0_177, %c0_178], %474 {strides = array<i32>} : memref<2x32xf32, #tpu.memory_space<vmem>>, vector<2x32xf32>,
    return
  }
}

</mosaic_0001>

<llo_original>
// kernel: custom_clip_forward.1
$region0: #{custom_clip_forward.1}
  #allocation0 [shape = 'u32[]', space=smem, size = 0x4, offset = 0x4, fixed_abs, tag = 'smem constant byte address 0x4 - core index']
  #allocation1 [shape = 'u32[72,128]{1,0:T(1,128)}', space=vmem, size = 0x9000, scoped, tag = 'internal scratch']
  #allocation2 [shape = 'f32[1,1]{1,0:T(1,128)S(1)}', space=vmem, size = 0x200, scoped, tag = 'scoped memory for custom_clip_forward.1']
  %s0 = inlined_call_operand.vmem [shape: f32[32,32], index: 0, kind: input, shape index: {}]
  %s1 = inlined_call_operand.vmem [shape: bf16[32,8], index: 1, kind: input, shape index: {}]
  %s2 = inlined_call_operand.vmem [shape: bf16[8,32], index: 2, kind: input, shape index: {}]
  %s3 = inlined_call_operand.<no memory space> [shape: f32[1,1], index: 3, kind: input, shape index: {}]
  %s4 = inlined_call_operand.vmem [shape: f32[16,32], index: 4, kind: input, shape index: {}]
  %s5 = inlined_call_operand.vmem [shape: f32[2,16], index: 5, kind: input, shape index: {}]
  %s6 = inlined_call_operand.vmem [shape: f32[2,1,32], index: 6, kind: input, shape index: {}]
  %s7 = inlined_call_operand.vmem [shape: f32[2,1,32], index: 7, kind: input, shape index: {}]
  %s8 = inlined_call_operand.vmem [shape: bf16[2,32,96], index: 8, kind: input, shape index: {}]
  %s9 = inlined_call_operand.vmem [shape: f32[2,1,96], index: 9, kind: input, shape index: {}]
  %s10 = inlined_call_operand.vmem [shape: bf16[2,32,32], index: 10, kind: input, shape index: {}]
  %s11 = inlined_call_operand.vmem [shape: f32[2,1,32], index: 11, kind: input, shape index: {}]
  %s12 = inlined_call_operand.vmem [shape: f32[2,1,32], index: 12, kind: input, shape index: {}]
  %s13 = inlined_call_operand.vmem [shape: f32[2,1,32], index: 13, kind: input, shape index: {}]
  %s14 = inlined_call_operand.vmem [shape: bf16[2,32,128], index: 14, kind: input, shape index: {}]
  %s15 = inlined_call_operand.vmem [shape: f32[2,1,128], index: 15, kind: input, shape index: {}]
  %s16 = inlined_call_operand.vmem [shape: bf16[2,128,32], index: 16, kind: input, shape index: {}]
  %s17 = inlined_call_operand.vmem [shape: f32[2,1,32], index: 17, kind: input, shape index: {}]
  %s18 = inlined_call_operand.vmem [shape: f32[1,32], index: 18, kind: input, shape index: {}]
  %s19 = inlined_call_operand.vmem [shape: f32[1,32], index: 19, kind: input, shape index: {}]
  %s20 = inlined_call_operand.vmem [shape: bf16[32,32], index: 20, kind: input, shape index: {}]
  %s21 = inlined_call_operand.vmem [shape: f32[2,32], index: 21, kind: output, shape index: {}]
  %s22 = sld [smem:[#allocation0]]
  $region94: #{custom_clip_forward.1} parent=0
    _
  %s24 = ssub.s32 1, %s22
  %s25 = scalar_select 0, %s24, %s22
  %v26 = vstv %s3
  %27 = vst [vmem:[#allocation2] sm:$0x1] %v26
  // Predicated region
  $region2: #{custom_clip_forward.1} parent=0 // pred_check
    _
  $region3: #{custom_clip_forward.1} parent=0 // pred_check_branch
    %29 = sbr.rel (0) target = $region5
  $region4: #{custom_clip_forward.1} parent=0 // pred_region
    _
  $region5: #{custom_clip_forward.1} parent=0 // pred_fallthru
    _
  // Predicated region
  $region6: #{custom_clip_forward.1} parent=0 // pred_check
    _
  $region7: #{custom_clip_forward.1} parent=0 // pred_check_branch
    %31 = sbr.rel (0) target = $region9
  $region8: #{custom_clip_forward.1} parent=0 // pred_region
    _
  $region9: #{custom_clip_forward.1} parent=0 // pred_fallthru
    _
  // Predicated region
  $region10: #{custom_clip_forward.1} parent=0 // pred_check
    _
  $region11: #{custom_clip_forward.1} parent=0 // pred_check_branch
    %33 = sbr.rel (0) target = $region13
  $region12: #{custom_clip_forward.1} parent=0 // pred_region
    _
  $region13: #{custom_clip_forward.1} parent=0 // pred_fallthru
    _
  // Predicated region
  $region14: #{custom_clip_forward.1} parent=0 // pred_check
    _
  $region15: #{custom_clip_forward.1} parent=0 // pred_check_branch
    %35 = sbr.rel (0) target = $region17
  $region16: #{custom_clip_forward.1} parent=0 // pred_region
    _
  $region17: #{custom_clip_forward.1} parent=0 // pred_fallthru
    _
  // Predicated region
  $region18: #{custom_clip_forward.1} parent=0 // pred_check
    _
  $region19: #{custom_clip_forward.1} parent=0 // pred_check_branch
    %37 = sbr.rel (0) target = $region21
  $region20: #{custom_clip_forward.1} parent=0 // pred_region
    _
  $region21: #{custom_clip_forward.1} parent=0 // pred_fallthru
    _
  // Predicated region
  $region22: #{custom_clip_forward.1} parent=0 // pred_check
    _
  $region23: #{custom_clip_forward.1} parent=0 // pred_check_branch
    %39 = sbr.rel (0) target = $region25
  $region24: #{custom_clip_forward.1} parent=0 // pred_region
    _
  $region25: #{custom_clip_forward.1} parent=0 // pred_fallthru
    _
  // Predicated region
  $region26: #{custom_clip_forward.1} parent=0 // pred_check
    _
  $region27: #{custom_clip_forward.1} parent=0 // pred_check_branch
    %41 = sbr.rel (0) target = $region29
  $region28: #{custom_clip_forward.1} parent=0 // pred_region
    _
  $region29: #{custom_clip_forward.1} parent=0 // pred_fallthru
    _
  // Predicated region
  $region30: #{custom_clip_forward.1} parent=0 // pred_check
    _
  $region31: #{custom_clip_forward.1} parent=0 // pred_check_branch
    %43 = sbr.rel (0) target = $region33
  $region32: #{custom_clip_forward.1} parent=0 // pred_region
    _
  $region33: #{custom_clip_forward.1} parent=0 // pred_fallthru
    _
  // Predicated region
  $region34: #{custom_clip_forward.1} parent=0 // pred_check
    _
  $region35: #{custom_clip_forward.1} parent=0 // pred_check_branch
    %45 = sbr.rel (0) target = $region37
  $region36: #{custom_clip_forward.1} parent=0 // pred_region
    _
  $region37: #{custom_clip_forward.1} parent=0 // pred_fallthru
    _
  // Predicated region
  $region38: #{custom_clip_forward.1} parent=0 // pred_check
    _
  $region39: #{custom_clip_forward.1} parent=0 // pred_check_branch
    %47 = sbr.rel (0) target = $region41
  $region40: #{custom_clip_forward.1} parent=0 // pred_region
    _
  $region41: #{custom_clip_forward.1} parent=0 // pred_fallthru
    _
  // Predicated region
  $region42: #{custom_clip_forward.1} parent=0 // pred_check
    _
  $region43: #{custom_clip_forward.1} parent=0 // pred_check_branch
    %49 = sbr.rel (0) target = $region45
  $region44: #{custom_clip_forward.1} parent=0 // pred_region
    _
  $region45: #{custom_clip_forward.1} parent=0 // pred_fallthru
    _
  // Predicated region
  $region46: #{custom_clip_forward.1} parent=0 // pred_check
    _
  $region47: #{custom_clip_forward.1} parent=0 // pred_check_branch
    %51 = sbr.rel (0) target = $region49
  $region48: #{custom_clip_forward.1} parent=0 // pred_region
    _
  $region49: #{custom_clip_forward.1} parent=0 // pred_fallthru
    _
  // Predicated region
  $region50: #{custom_clip_forward.1} parent=0 // pred_check
    _
  $region51: #{custom_clip_forward.1} parent=0 // pred_check_branch
    %53 = sbr.rel (0) target = $region53
  $region52: #{custom_clip_forward.1} parent=0 // pred_region
    _
  $region53: #{custom_clip_forward.1} parent=0 // pred_fallthru
    _
  // Predicated region
  $region54: #{custom_clip_forward.1} parent=0 // pred_check
    _
  $region55: #{custom_clip_forward.1} parent=0 // pred_check_branch
    %55 = sbr.rel (0) target = $region57
  $region56: #{custom_clip_forward.1} parent=0 // pred_region
    _
  $region57: #{custom_clip_forward.1} parent=0 // pred_fallthru
    _
  // Predicated region
  $region58: #{custom_clip_forward.1} parent=0 // pred_check
    _
  $region59: #{custom_clip_forward.1} parent=0 // pred_check_branch
    %57 = sbr.rel (0) target = $region61
  $region60: #{custom_clip_forward.1} parent=0 // pred_region
    _
  $region61: #{custom_clip_forward.1} parent=0 // pred_fallthru
    _
  // Predicated region
  $region62: #{custom_clip_forward.1} parent=0 // pred_check
    _
  $region63: #{custom_clip_forward.1} parent=0 // pred_check_branch
    %59 = sbr.rel (0) target = $region65
  $region64: #{custom_clip_forward.1} parent=0 // pred_region
    _
  $region65: #{custom_clip_forward.1} parent=0 // pred_fallthru
    _
  // Predicated region
  $region66: #{custom_clip_forward.1} parent=0 // pred_check
    _
  $region67: #{custom_clip_forward.1} parent=0 // pred_check_branch
    %61 = sbr.rel (0) target = $region69
  $region68: #{custom_clip_forward.1} parent=0 // pred_region
    _
  $region69: #{custom_clip_forward.1} parent=0 // pred_fallthru
    _
  // Predicated region
  $region70: #{custom_clip_forward.1} parent=0 // pred_check
    _
  $region71: #{custom_clip_forward.1} parent=0 // pred_check_branch
    %63 = sbr.rel (0) target = $region73
  $region72: #{custom_clip_forward.1} parent=0 // pred_region
    _
  $region73: #{custom_clip_forward.1} parent=0 // pred_fallthru
    _
  // Predicated region
  $region74: #{custom_clip_forward.1} parent=0 // pred_check
    _
  $region75: #{custom_clip_forward.1} parent=0 // pred_check_branch
    %65 = sbr.rel (0) target = $region77
  $region76: #{custom_clip_forward.1} parent=0 // pred_region
    _
  $region77: #{custom_clip_forward.1} parent=0 // pred_fallthru
    _
  // Predicated region
  $region78: #{custom_clip_forward.1} parent=0 // pred_check
    _
  $region79: #{custom_clip_forward.1} parent=0 // pred_check_branch
    %67 = sbr.rel (0) target = $region81
  $region80: #{custom_clip_forward.1} parent=0 // pred_region
    _
  $region81: #{custom_clip_forward.1} parent=0 // pred_fallthru
    _
  // Predicated region
  $region82: #{custom_clip_forward.1} parent=0 // pred_check
    _
  $region83: #{custom_clip_forward.1} parent=0 // pred_check_branch
    %69 = sbr.rel (0) target = $region85
  $region84: #{custom_clip_forward.1} parent=0 // pred_region
    _
  $region85: #{custom_clip_forward.1} parent=0 // pred_fallthru
    _
  %v71 = vld [vmem:[%s4] sm:$0xff]
  %v72 = vld [vmem:[%s4 + $0x8] sm:$0xff]
  %v73 = vlaneseq
  %v74 = vshrl.u32 %v73, 7
  %v75 = vlaneseq
  %v76 = vand.u32 %v75, 127
  %vm77 = vcmp.gt.s32.totalorder %v76, %v74
  %v78 = vsel %vm77, -1e+09, 0.0
  %v79 = vld [vmem:[%s6] sm:$0x1]
  %v80 = vld [vmem:[%s7] sm:$0x1]
  %vm81 = vcmask 261120
  %v82 = vsel %vm81, %v71, 0.0
  %83 = vadd.xlane.f32.xlu0 %v82
  %v84 = vpop.xlane.xlu0 %83
  %v85 = vsel %vm81, %v72, 0.0
  %86 = vadd.xlane.f32.xlu0 %v85
  %v87 = vpop.xlane.xlu0 %86
  %v88 = vrcp.pop 32.0
  %v89 = vmul.f32 32.0, %v88
  %v90 = vsub.f32 1.0, %v89
  %v91 = vmul.f32 %v88, %v90
  %v92 = vadd.f32 %v88, %v91
  %vm93 = vweird.f32 %v88
  %v94 = vsel %vm93, %v88, %v92
  %v95 = vmul.f32 %v84, %v94
  %v96 = vmul.f32 %v87, %v94
  %v97 = vsub.f32 %v71, %v95
  %v98 = vsub.f32 %v72, %v96
  %v99 = vmul.f32 %v97, %v97
  %v100 = vmul.f32 %v98, %v98
  %v101 = vsel %vm81, %v99, 0.0
  %102 = vadd.xlane.f32.xlu0 %v101
  %v103 = vpop.xlane.xlu0 %102
  %v104 = vsel %vm81, %v100, 0.0
  %105 = vadd.xlane.f32.xlu0 %v104
  %v106 = vpop.xlane.xlu0 %105
  %v107 = vmul.f32 %v103, %v94
  %v108 = vmul.f32 %v106, %v94
  %v109 = vadd.f32 %v107, 1e-05
  %v110 = vadd.f32 %v108, 1e-05
  %v111 = vrsqrt.pop %v109
  %v112 = vmul.f32 %v111, %v109
  %v113 = vmul.f32 %v112, %v111
  %v114 = vmul.f32 0.5, %v113
  %v115 = vsub.f32 1.5, %v114
  %v116 = vmul.f32 %v111, %v115
  %vm117 = vweird.f32 %v109
  %vm118 = vweird.f32 %v111
  %vm119 = vmor %vm117, %vm118
  %v120 = vsel %vm119, %v111, %v116
  %v121 = vrsqrt.pop %v110
  %v122 = vmul.f32 %v121, %v110
  %v123 = vmul.f32 %v122, %v121
  %v124 = vmul.f32 0.5, %v123
  %v125 = vsub.f32 1.5, %v124
  %v126 = vmul.f32 %v121, %v125
  %vm127 = vweird.f32 %v110
  %vm128 = vweird.f32 %v121
  %vm129 = vmor %vm127, %vm128
  %v130 = vsel %vm129, %v121, %v126
  %v131 = vmul.f32 %v97, %v120
  %v132 = vmul.f32 %v98, %v130
  %v134 = vperm.slane %v79, 0
  %v136 = vmul.f32 %v131, %v134
  %v137 = vmul.f32 %v132, %v134
  %v139 = vperm.slane %v80, 0
  %v141 = vadd.f32 %v136, %v139
  %v142 = vadd.f32 %v137, %v139
  %v143 = vpack.c.bf16 %v142, %v141
  %v144 = vld [vmem:[%s8] sm:$0xf]
  %v145 = vld [vmem:[%s8 + $0x4] sm:$0xf]
  %v146 = vld [vmem:[%s8 + $0x8] sm:$0xf]
  %v147 = vld [vmem:[%s8 + $0xc] sm:$0xf]
  %v148 = vld [vmem:[%s9] sm:$0x1]
  %v150 = vperm.slane %v148, 0
  %v156 = vunpack.c.l.b16 %v144
  %v157 = vunpack.c.l.b16 %v145
  %v158 = vunpack.c.l.b16 %v146
  %v159 = vunpack.c.l.b16 %v147
  %v160 = vpack.c.b16 %v157, %v156
  %v161 = vpack.c.b16 %v159, %v158
  %v165 = vsel %vm81, %v143, 0
  %167 = vmatpush.bf16.msra.mxu0 0
  %168 = vmatpush.bf16.msra.mxu0 0
  %169 = vmatpush.bf16.msra.mxu0 0
  %170 = vmatpush.bf16.msra.mxu0 0
  %171 = vmatpush.bf16.msra.mxu0 0
  %172 = vmatpush.bf16.msra.mxu0 0
  %173 = vmatpush.bf16.msra.mxu0 %v161
  %174 = vmatpush.bf16.msra.mxu0 %v160
  %175 = vmatmul.bf16.gmra.mxu0 %v165
  %v176 = vpop.f32.mrf.mxu0
  %v177 = vadd.f32 %v150, %v176
  %v178 = vpop.f32.mrf.mxu0
  %v179 = vadd.f32 %v150, %v178
  %180 = vdwg.mxu0
  %v181 = vpack.c.bf16 %v177, %v177
  %v182 = vpack.c.bf16 %v179, %v179
  %v184 = vunpack.c.l.b16 %v181
  %v185 = vpack.c.b16 %v184, %v184
  %186 = vrot.lane.b32.xlu0 %v185, 96
  %v187 = vpop.permute.xlu0 %186
  %vm188 = vcmask 64512
  %v190 = vsel %vm188, %v181, 0
  %v193 = vsel %vm188, %v187, 0
  %195 = vmatpush.bf16.xpose.msra.mxu0 0
  %196 = vmatpush.bf16.xpose.msra.mxu0 0
  %197 = vmatpush.bf16.xpose.msra.mxu0 0
  %198 = vmatpush.bf16.xpose.msra.mxu0 0
  %199 = vmatpush.bf16.xpose.msra.mxu0 0
  %200 = vmatpush.bf16.xpose.msra.mxu0 0
  %201 = vmatpush.bf16.xpose.msra.mxu0 0
  %202 = vmatpush.bf16.xpose.msra.mxu0 %v193
  %203 = vmatmul.bf16.gmra.mxu0 %v190
  %v204 = vpop.f32.mrf.mxu0
  %v205 = vadd.f32 0.0, %v204
  %v206 = vpop.f32.mrf.mxu0
  %207 = vdwg.mxu0
  %v209 = vunpack.c.l.b16 %v182
  %v210 = vpack.c.b16 %v209, %v209
  %211 = vrot.lane.b32.xlu0 %v210, 96
  %v212 = vpop.permute.xlu0 %211
  %v214 = vsel %vm188, %v182, 0
  %v217 = vsel %vm188, %v212, 0
  %219 = vmatpush.bf16.xpose.msra.mxu0 0
  %220 = vmatpush.bf16.xpose.msra.mxu0 0
  %221 = vmatpush.bf16.xpose.msra.mxu0 0
  %222 = vmatpush.bf16.xpose.msra.mxu0 0
  %223 = vmatpush.bf16.xpose.msra.mxu0 0
  %224 = vmatpush.bf16.xpose.msra.mxu0 0
  %225 = vmatpush.bf16.xpose.msra.mxu0 0
  %226 = vmatpush.bf16.xpose.msra.mxu0 %v217
  %227 = vmatmul.bf16.gmra.mxu0 %v214
  %v228 = vpop.f32.mrf.mxu0
  %v229 = vadd.f32 0.0, %v228
  %v230 = vpop.f32.mrf.mxu0
  %231 = vdwg.mxu0
  %v232 = vmul.f32 %v205, 0.35355338
  %v233 = vmul.f32 %v229, 0.35355338
  %v234 = vadd.f32 %v232, %v78
  %v235 = vadd.f32 %v233, %v78
  %v236 = vsel %vm188, %v234, -inf
  %237 = vmax.xlane.f32.xlu0 %v236
  %v238 = vpop.xlane.xlu0 %237
  %v239 = vsel %vm188, %v235, -inf
  %240 = vmax.xlane.f32.xlu0 %v239
  %v241 = vpop.xlane.xlu0 %240
  %v242 = vsub.f32 %v234, %v238
  %v243 = vsub.f32 %v235, %v241
  %v244 = vmul.f32 %v242, 1.442695
  %v245 = vpow.pop %v244
  %v246 = vmul.f32 %v243, 1.442695
  %v247 = vpow.pop %v246
  %v248 = vsel %vm188, %v245, 0.0
  %249 = vadd.xlane.f32.xlu0 %v248
  %v250 = vpop.xlane.xlu0 %249
  %v251 = vsel %vm188, %v247, 0.0
  %252 = vadd.xlane.f32.xlu0 %v251
  %v253 = vpop.xlane.xlu0 %252
  %v254 = vrcp.pop %v250
  %v255 = vrcp.pop %v253
  %v256 = vmul.f32 %v245, %v254
  %v257 = vmul.f32 %v247, %v255
  %v258 = vpack.c.bf16 %v256, %v256
  %v259 = vpack.c.bf16 %v257, %v257
  %260 = vrot.lane.b32.xlu0 %v185, 64
  %v261 = vpop.permute.xlu0 %260
  %v263 = vsel %vm188, %v258, 0
  %vm265 = vcmask 1043456
  %v267 = vsel %vm265, %v261, 0
  %269 = vmatpush.bf16.msra.mxu0 0
  %270 = vmatpush.bf16.msra.mxu0 0
  %271 = vmatpush.bf16.msra.mxu0 0
  %272 = vmatpush.bf16.msra.mxu0 0
  %273 = vmatpush.bf16.msra.mxu0 0
  %274 = vmatpush.bf16.msra.mxu0 0
  %275 = vmatpush.bf16.msra.mxu0 0
  %276 = vmatpush.bf16.msra.mxu0 %v267
  %277 = vmatmul.bf16.gmra.mxu0 %v263
  %v278 = vpop.f32.mrf.mxu0
  %v279 = vadd.f32 0.0, %v278
  %v280 = vpop.f32.mrf.mxu0
  %281 = vdwg.mxu0
  %282 = vrot.lane.b32.xlu0 %v210, 64
  %v283 = vpop.permute.xlu0 %282
  %v285 = vsel %vm188, %v259, 0
  %v288 = vsel %vm265, %v283, 0
  %290 = vmatpush.bf16.msra.mxu0 0
  %291 = vmatpush.bf16.msra.mxu0 0
  %292 = vmatpush.bf16.msra.mxu0 0
  %293 = vmatpush.bf16.msra.mxu0 0
  %294 = vmatpush.bf16.msra.mxu0 0
  %295 = vmatpush.bf16.msra.mxu0 0
  %296 = vmatpush.bf16.msra.mxu0 0
  %297 = vmatpush.bf16.msra.mxu0 %v288
  %298 = vmatmul.bf16.gmra.mxu0 %v285
  %v299 = vpop.f32.mrf.mxu0
  %v300 = vadd.f32 0.0, %v299
  %v301 = vpop.f32.mrf.mxu0
  %302 = vdwg.mxu0
  %303 = vrot.lane.b32.xlu0 %v185, 120
  %v304 = vpop.permute.xlu0 %303
  %305 = vrot.lane.b32.xlu0 %v185, 88
  %v306 = vpop.permute.xlu0 %305
  %v308 = vsel %vm188, %v304, 0
  %v311 = vsel %vm188, %v306, 0
  %313 = vmatpush.bf16.xpose.msra.mxu0 0
  %314 = vmatpush.bf16.xpose.msra.mxu0 0
  %315 = vmatpush.bf16.xpose.msra.mxu0 0
  %316 = vmatpush.bf16.xpose.msra.mxu0 0
  %317 = vmatpush.bf16.xpose.msra.mxu0 0
  %318 = vmatpush.bf16.xpose.msra.mxu0 0
  %319 = vmatpush.bf16.xpose.msra.mxu0 0
  %320 = vmatpush.bf16.xpose.msra.mxu0 %v311
  %321 = vmatmul.bf16.gmra.mxu0 %v308
  %v322 = vpop.f32.mrf.mxu0
  %v323 = vadd.f32 0.0, %v322
  %v324 = vpop.f32.mrf.mxu0
  %325 = vdwg.mxu0
  %326 = vrot.lane.b32.xlu0 %v210, 120
  %v327 = vpop.permute.xlu0 %326
  %328 = vrot.lane.b32.xlu0 %v210, 88
  %v329 = vpop.permute.xlu0 %328
  %v331 = vsel %vm188, %v327, 0
  %v334 = vsel %vm188, %v329, 0
  %336 = vmatpush.bf16.xpose.msra.mxu0 0
  %337 = vmatpush.bf16.xpose.msra.mxu0 0
  %338 = vmatpush.bf16.xpose.msra.mxu0 0
  %339 = vmatpush.bf16.xpose.msra.mxu0 0
  %340 = vmatpush.bf16.xpose.msra.mxu0 0
  %341 = vmatpush.bf16.xpose.msra.mxu0 0
  %342 = vmatpush.bf16.xpose.msra.mxu0 0
  %343 = vmatpush.bf16.xpose.msra.mxu0 %v334
  %344 = vmatmul.bf16.gmra.mxu0 %v331
  %v345 = vpop.f32.mrf.mxu0
  %v346 = vadd.f32 0.0, %v345
  %v347 = vpop.f32.mrf.mxu0
  %348 = vdwg.mxu0
  %v349 = vmul.f32 %v323, 0.35355338
  %v350 = vmul.f32 %v346, 0.35355338
  %v351 = vadd.f32 %v349, %v78
  %v352 = vadd.f32 %v350, %v78
  %v353 = vsel %vm188, %v351, -inf
  %354 = vmax.xlane.f32.xlu0 %v353
  %v355 = vpop.xlane.xlu0 %354
  %v356 = vsel %vm188, %v352, -inf
  %357 = vmax.xlane.f32.xlu0 %v356
  %v358 = vpop.xlane.xlu0 %357
  %v359 = vsub.f32 %v351, %v355
  %v360 = vsub.f32 %v352, %v358
  %v361 = vmul.f32 %v359, 1.442695
  %v362 = vpow.pop %v361
  %v363 = vmul.f32 %v360, 1.442695
  %v364 = vpow.pop %v363
  %v365 = vsel %vm188, %v362, 0.0
  %366 = vadd.xlane.f32.xlu0 %v365
  %v367 = vpop.xlane.xlu0 %366
  %v368 = vsel %vm188, %v364, 0.0
  %369 = vadd.xlane.f32.xlu0 %v368
  %v370 = vpop.xlane.xlu0 %369
  %v371 = vrcp.pop %v367
  %v372 = vrcp.pop %v370
  %v373 = vmul.f32 %v362, %v371
  %v374 = vmul.f32 %v364, %v372
  %v375 = vpack.c.bf16 %v373, %v373
  %v376 = vpack.c.bf16 %v374, %v374
  %377 = vrot.lane.b32.xlu0 %v185, 56
  %v378 = vpop.permute.xlu0 %377
  %v380 = vsel %vm188, %v375, 0
  %v383 = vsel %vm265, %v378, 0
  %385 = vmatpush.bf16.msra.mxu0 0
  %386 = vmatpush.bf16.msra.mxu0 0
  %387 = vmatpush.bf16.msra.mxu0 0
  %388 = vmatpush.bf16.msra.mxu0 0
  %389 = vmatpush.bf16.msra.mxu0 0
  %390 = vmatpush.bf16.msra.mxu0 0
  %391 = vmatpush.bf16.msra.mxu0 0
  %392 = vmatpush.bf16.msra.mxu0 %v383
  %393 = vmatmul.bf16.gmra.mxu0 %v380
  %v394 = vpop.f32.mrf.mxu0
  %v395 = vadd.f32 0.0, %v394
  %v396 = vpop.f32.mrf.mxu0
  %397 = vdwg.mxu0
  %398 = vrot.lane.b32.xlu0 %v210, 56
  %v399 = vpop.permute.xlu0 %398
  %v401 = vsel %vm188, %v376, 0
  %v404 = vsel %vm265, %v399, 0
  %406 = vmatpush.bf16.msra.mxu0 0
  %407 = vmatpush.bf16.msra.mxu0 0
  %408 = vmatpush.bf16.msra.mxu0 0
  %409 = vmatpush.bf16.msra.mxu0 0
  %410 = vmatpush.bf16.msra.mxu0 0
  %411 = vmatpush.bf16.msra.mxu0 0
  %412 = vmatpush.bf16.msra.mxu0 0
  %413 = vmatpush.bf16.msra.mxu0 %v404
  %414 = vmatmul.bf16.gmra.mxu0 %v401
  %v415 = vpop.f32.mrf.mxu0
  %v416 = vadd.f32 0.0, %v415
  %v417 = vpop.f32.mrf.mxu0
  %418 = vdwg.mxu0
  %419 = vrot.lane.b32.xlu0 %v185, 112
  %v420 = vpop.permute.xlu0 %419
  %421 = vrot.lane.b32.xlu0 %v185, 80
  %v422 = vpop.permute.xlu0 %421
  %v424 = vsel %vm188, %v420, 0
  %v427 = vsel %vm188, %v422, 0
  %429 = vmatpush.bf16.xpose.msra.mxu0 0
  %430 = vmatpush.bf16.xpose.msra.mxu0 0
  %431 = vmatpush.bf16.xpose.msra.mxu0 0
  %432 = vmatpush.bf16.xpose.msra.mxu0 0
  %433 = vmatpush.bf16.xpose.msra.mxu0 0
  %434 = vmatpush.bf16.xpose.msra.mxu0 0
  %435 = vmatpush.bf16.xpose.msra.mxu0 0
  %436 = vmatpush.bf16.xpose.msra.mxu0 %v427
  %437 = vmatmul.bf16.gmra.mxu0 %v424
  %v438 = vpop.f32.mrf.mxu0
  %v439 = vadd.f32 0.0, %v438
  %v440 = vpop.f32.mrf.mxu0
  %441 = vdwg.mxu0
  %442 = vrot.lane.b32.xlu0 %v210, 112
  %v443 = vpop.permute.xlu0 %442
  %444 = vrot.lane.b32.xlu0 %v210, 80
  %v445 = vpop.permute.xlu0 %444
  %v447 = vsel %vm188, %v443, 0
  %v450 = vsel %vm188, %v445, 0
  %452 = vmatpush.bf16.xpose.msra.mxu0 0
  %453 = vmatpush.bf16.xpose.msra.mxu0 0
  %454 = vmatpush.bf16.xpose.msra.mxu0 0
  %455 = vmatpush.bf16.xpose.msra.mxu0 0
  %456 = vmatpush.bf16.xpose.msra.mxu0 0
  %457 = vmatpush.bf16.xpose.msra.mxu0 0
  %458 = vmatpush.bf16.xpose.msra.mxu0 0
  %459 = vmatpush.bf16.xpose.msra.mxu0 %v450
  %460 = vmatmul.bf16.gmra.mxu0 %v447
  %v461 = vpop.f32.mrf.mxu0
  %v462 = vadd.f32 0.0, %v461
  %v463 = vpop.f32.mrf.mxu0
  %464 = vdwg.mxu0
  %v465 = vmul.f32 %v439, 0.35355338
  %v466 = vmul.f32 %v462, 0.35355338
  %v467 = vadd.f32 %v465, %v78
  %v468 = vadd.f32 %v466, %v78
  %v469 = vsel %vm188, %v467, -inf
  %470 = vmax.xlane.f32.xlu0 %v469
  %v471 = vpop.xlane.xlu0 %470
  %v472 = vsel %vm188, %v468, -inf
  %473 = vmax.xlane.f32.xlu0 %v472
  %v474 = vpop.xlane.xlu0 %473
  %v475 = vsub.f32 %v467, %v471
  %v476 = vsub.f32 %v468, %v474
  %v477 = vmul.f32 %v475, 1.442695
  %v478 = vpow.pop %v477
  %v479 = vmul.f32 %v476, 1.442695
  %v480 = vpow.pop %v479
  %v481 = vsel %vm188, %v478, 0.0
  %482 = vadd.xlane.f32.xlu0 %v481
  %v483 = vpop.xlane.xlu0 %482
  %v484 = vsel %vm188, %v480, 0.0
  %485 = vadd.xlane.f32.xlu0 %v484
  %v486 = vpop.xlane.xlu0 %485
  %v487 = vrcp.pop %v483
  %v488 = vrcp.pop %v486
  %v489 = vmul.f32 %v478, %v487
  %v490 = vmul.f32 %v480, %v488
  %v491 = vpack.c.bf16 %v489, %v489
  %v492 = vpack.c.bf16 %v490, %v490
  %493 = vrot.lane.b32.xlu0 %v185, 48
  %v494 = vpop.permute.xlu0 %493
  %v496 = vsel %vm188, %v491, 0
  %v499 = vsel %vm265, %v494, 0
  %501 = vmatpush.bf16.msra.mxu0 0
  %502 = vmatpush.bf16.msra.mxu0 0
  %503 = vmatpush.bf16.msra.mxu0 0
  %504 = vmatpush.bf16.msra.mxu0 0
  %505 = vmatpush.bf16.msra.mxu0 0
  %506 = vmatpush.bf16.msra.mxu0 0
  %507 = vmatpush.bf16.msra.mxu0 0
  %508 = vmatpush.bf16.msra.mxu0 %v499
  %509 = vmatmul.bf16.gmra.mxu0 %v496
  %v510 = vpop.f32.mrf.mxu0
  %v511 = vadd.f32 0.0, %v510
  %v512 = vpop.f32.mrf.mxu0
  %513 = vdwg.mxu0
  %514 = vrot.lane.b32.xlu0 %v210, 48
  %v515 = vpop.permute.xlu0 %514
  %v517 = vsel %vm188, %v492, 0
  %v520 = vsel %vm265, %v515, 0
  %522 = vmatpush.bf16.msra.mxu0 0
  %523 = vmatpush.bf16.msra.mxu0 0
  %524 = vmatpush.bf16.msra.mxu0 0
  %525 = vmatpush.bf16.msra.mxu0 0
  %526 = vmatpush.bf16.msra.mxu0 0
  %527 = vmatpush.bf16.msra.mxu0 0
  %528 = vmatpush.bf16.msra.mxu0 0
  %529 = vmatpush.bf16.msra.mxu0 %v520
  %530 = vmatmul.bf16.gmra.mxu0 %v517
  %v531 = vpop.f32.mrf.mxu0
  %v532 = vadd.f32 0.0, %v531
  %v533 = vpop.f32.mrf.mxu0
  %534 = vdwg.mxu0
  %535 = vrot.lane.b32.xlu0 %v185, 104
  %v536 = vpop.permute.xlu0 %535
  %537 = vrot.lane.b32.xlu0 %v185, 72
  %v538 = vpop.permute.xlu0 %537
  %v540 = vsel %vm188, %v536, 0
  %v543 = vsel %vm188, %v538, 0
  %545 = vmatpush.bf16.xpose.msra.mxu0 0
  %546 = vmatpush.bf16.xpose.msra.mxu0 0
  %547 = vmatpush.bf16.xpose.msra.mxu0 0
  %548 = vmatpush.bf16.xpose.msra.mxu0 0
  %549 = vmatpush.bf16.xpose.msra.mxu0 0
  %550 = vmatpush.bf16.xpose.msra.mxu0 0
  %551 = vmatpush.bf16.xpose.msra.mxu0 0
  %552 = vmatpush.bf16.xpose.msra.mxu0 %v543
  %553 = vmatmul.bf16.gmra.mxu0 %v540
  %v554 = vpop.f32.mrf.mxu0
  %v555 = vadd.f32 0.0, %v554
  %v556 = vpop.f32.mrf.mxu0
  %557 = vdwg.mxu0
  %558 = vrot.lane.b32.xlu0 %v210, 104
  %v559 = vpop.permute.xlu0 %558
  %560 = vrot.lane.b32.xlu0 %v210, 72
  %v561 = vpop.permute.xlu0 %560
  %v563 = vsel %vm188, %v559, 0
  %v566 = vsel %vm188, %v561, 0
  %568 = vmatpush.bf16.xpose.msra.mxu0 0
  %569 = vmatpush.bf16.xpose.msra.mxu0 0
  %570 = vmatpush.bf16.xpose.msra.mxu0 0
  %571 = vmatpush.bf16.xpose.msra.mxu0 0
  %572 = vmatpush.bf16.xpose.msra.mxu0 0
  %573 = vmatpush.bf16.xpose.msra.mxu0 0
  %574 = vmatpush.bf16.xpose.msra.mxu0 0
  %575 = vmatpush.bf16.xpose.msra.mxu0 %v566
  %576 = vmatmul.bf16.gmra.mxu0 %v563
  %v577 = vpop.f32.mrf.mxu0
  %v578 = vadd.f32 0.0, %v577
  %v579 = vpop.f32.mrf.mxu0
  %580 = vdwg.mxu0
  %v581 = vmul.f32 %v555, 0.35355338
  %v582 = vmul.f32 %v578, 0.35355338
  %v583 = vadd.f32 %v581, %v78
  %v584 = vadd.f32 %v582, %v78
  %v585 = vsel %vm188, %v583, -inf
  %586 = vmax.xlane.f32.xlu0 %v585
  %v587 = vpop.xlane.xlu0 %586
  %v588 = vsel %vm188, %v584, -inf
  %589 = vmax.xlane.f32.xlu0 %v588
  %v590 = vpop.xlane.xlu0 %589
  %v591 = vsub.f32 %v583, %v587
  %v592 = vsub.f32 %v584, %v590
  %v593 = vmul.f32 %v591, 1.442695
  %v594 = vpow.pop %v593
  %v595 = vmul.f32 %v592, 1.442695
  %v596 = vpow.pop %v595
  %v597 = vsel %vm188, %v594, 0.0
  %598 = vadd.xlane.f32.xlu0 %v597
  %v599 = vpop.xlane.xlu0 %598
  %v600 = vsel %vm188, %v596, 0.0
  %601 = vadd.xlane.f32.xlu0 %v600
  %v602 = vpop.xlane.xlu0 %601
  %v603 = vrcp.pop %v599
  %v604 = vrcp.pop %v602
  %v605 = vmul.f32 %v594, %v603
  %v606 = vmul.f32 %v596, %v604
  %v607 = vpack.c.bf16 %v605, %v605
  %v608 = vpack.c.bf16 %v606, %v606
  %609 = vrot.lane.b32.xlu0 %v185, 40
  %v610 = vpop.permute.xlu0 %609
  %v612 = vsel %vm188, %v607, 0
  %v615 = vsel %vm265, %v610, 0
  %617 = vmatpush.bf16.msra.mxu0 0
  %618 = vmatpush.bf16.msra.mxu0 0
  %619 = vmatpush.bf16.msra.mxu0 0
  %620 = vmatpush.bf16.msra.mxu0 0
  %621 = vmatpush.bf16.msra.mxu0 0
  %622 = vmatpush.bf16.msra.mxu0 0
  %623 = vmatpush.bf16.msra.mxu0 0
  %624 = vmatpush.bf16.msra.mxu0 %v615
  %625 = vmatmul.bf16.gmra.mxu0 %v612
  %v626 = vpop.f32.mrf.mxu0
  %v627 = vadd.f32 0.0, %v626
  %v628 = vpop.f32.mrf.mxu0
  %629 = vdwg.mxu0
  %630 = vrot.lane.b32.xlu0 %v210, 40
  %v631 = vpop.permute.xlu0 %630
  %v633 = vsel %vm188, %v608, 0
  %v636 = vsel %vm265, %v631, 0
  %638 = vmatpush.bf16.msra.mxu0 0
  %639 = vmatpush.bf16.msra.mxu0 0
  %640 = vmatpush.bf16.msra.mxu0 0
  %641 = vmatpush.bf16.msra.mxu0 0
  %642 = vmatpush.bf16.msra.mxu0 0
  %643 = vmatpush.bf16.msra.mxu0 0
  %644 = vmatpush.bf16.msra.mxu0 0
  %645 = vmatpush.bf16.msra.mxu0 %v636
  %646 = vmatmul.bf16.gmra.mxu0 %v633
  %v647 = vpop.f32.mrf.mxu0
  %v648 = vadd.f32 0.0, %v647
  %v649 = vpop.f32.mrf.mxu0
  %650 = vdwg.mxu0
  %653 = vrot.lane.b32.xlu0 %v395, 8
  %v654 = vpop.permute.xlu0 %653
  %655 = vrot.lane.b32.xlu0 %v416, 8
  %v656 = vpop.permute.xlu0 %655
  %661 = vrot.lane.b32.xlu0 %v511, 16
  %v662 = vpop.permute.xlu0 %661
  %663 = vrot.lane.b32.xlu0 %v532, 16
  %v664 = vpop.permute.xlu0 %663
  %669 = vrot.lane.b32.xlu0 %v627, 24
  %v670 = vpop.permute.xlu0 %669
  %671 = vrot.lane.b32.xlu0 %v648, 24
  %v672 = vpop.permute.xlu0 %671
  %v675 = vsel %vm188, %v279, %v654
  %v676 = vsel %vm188, %v300, %v656
  %vm677 = vcmask 130048
  %v678 = vsel %vm677, %v675, %v662
  %v679 = vsel %vm677, %v676, %v664
  %vm680 = vcmask 195584
  %v681 = vsel %vm680, %v678, %v670
  %v682 = vsel %vm680, %v679, %v672
  %v683 = vpack.c.bf16 %v682, %v681
  %v684 = vld [vmem:[%s10] sm:$0xf]
  %v685 = vld [vmem:[%s10 + $0x4] sm:$0xf]
  %v686 = vld [vmem:[%s10 + $0x8] sm:$0xf]
  %v687 = vld [vmem:[%s10 + $0xc] sm:$0xf]
  %v692 = vunpack.c.l.b16 %v684
  %v693 = vunpack.c.l.b16 %v685
  %v694 = vunpack.c.l.b16 %v686
  %v695 = vunpack.c.l.b16 %v687
  %v696 = vpack.c.b16 %v693, %v692
  %v697 = vpack.c.b16 %v695, %v694
  %v701 = vsel %vm81, %v683, 0
  %703 = vmatpush.bf16.msra.mxu0 0
  %704 = vmatpush.bf16.msra.mxu0 0
  %705 = vmatpush.bf16.msra.mxu0 0
  %706 = vmatpush.bf16.msra.mxu0 0
  %707 = vmatpush.bf16.msra.mxu0 0
  %708 = vmatpush.bf16.msra.mxu0 0
  %709 = vmatpush.bf16.msra.mxu0 %v697
  %710 = vmatpush.bf16.msra.mxu0 %v696
  %711 = vmatmul.bf16.gmra.mxu0 %v701
  %v712 = vpop.f32.mrf.mxu0
  %v713 = vadd.f32 0.0, %v712
  %v714 = vpop.f32.mrf.mxu0
  %v715 = vadd.f32 0.0, %v714
  %716 = vdwg.mxu0
  %v717 = vadd.f32 %v71, %v713
  %v718 = vadd.f32 %v72, %v715
  %v719 = vld [vmem:[%s11] sm:$0x1]
  %v721 = vperm.slane %v719, 0
  %v723 = vadd.f32 %v717, %v721
  %v724 = vadd.f32 %v718, %v721
  %v725 = vld [vmem:[%s12] sm:$0x1]
  %v726 = vld [vmem:[%s13] sm:$0x1]
  %v727 = vsel %vm81, %v723, 0.0
  %728 = vadd.xlane.f32.xlu0 %v727
  %v729 = vpop.xlane.xlu0 %728
  %v730 = vsel %vm81, %v724, 0.0
  %731 = vadd.xlane.f32.xlu0 %v730
  %v732 = vpop.xlane.xlu0 %731
  %v733 = vmul.f32 %v729, %v94
  %v734 = vmul.f32 %v732, %v94
  %v735 = vsub.f32 %v723, %v733
  %v736 = vsub.f32 %v724, %v734
  %v737 = vmul.f32 %v735, %v735
  %v738 = vmul.f32 %v736, %v736
  %v739 = vsel %vm81, %v737, 0.0
  %740 = vadd.xlane.f32.xlu0 %v739
  %v741 = vpop.xlane.xlu0 %740
  %v742 = vsel %vm81, %v738, 0.0
  %743 = vadd.xlane.f32.xlu0 %v742
  %v744 = vpop.xlane.xlu0 %743
  %v745 = vmul.f32 %v741, %v94
  %v746 = vmul.f32 %v744, %v94
  %v747 = vadd.f32 %v745, 1e-05
  %v748 = vadd.f32 %v746, 1e-05
  %v749 = vrsqrt.pop %v747
  %v750 = vmul.f32 %v749, %v747
  %v751 = vmul.f32 %v750, %v749
  %v752 = vmul.f32 0.5, %v751
  %v753 = vsub.f32 1.5, %v752
  %v754 = vmul.f32 %v749, %v753
  %vm755 = vweird.f32 %v747
  %vm756 = vweird.f32 %v749
  %vm757 = vmor %vm755, %vm756
  %v758 = vsel %vm757, %v749, %v754
  %v759 = vrsqrt.pop %v748
  %v760 = vmul.f32 %v759, %v748
  %v761 = vmul.f32 %v760, %v759
  %v762 = vmul.f32 0.5, %v761
  %v763 = vsub.f32 1.5, %v762
  %v764 = vmul.f32 %v759, %v763
  %vm765 = vweird.f32 %v748
  %vm766 = vweird.f32 %v759
  %vm767 = vmor %vm765, %vm766
  %v768 = vsel %vm767, %v759, %v764
  %v769 = vmul.f32 %v735, %v758
  %v770 = vmul.f32 %v736, %v768
  %v772 = vperm.slane %v725, 0
  %v774 = vmul.f32 %v769, %v772
  %v775 = vmul.f32 %v770, %v772
  %v777 = vperm.slane %v726, 0
  %v779 = vadd.f32 %v774, %v777
  %v780 = vadd.f32 %v775, %v777
  %v781 = vpack.c.bf16 %v780, %v779
  %v782 = vld [vmem:[%s14] sm:$0xf]
  %v783 = vld [vmem:[%s14 + $0x4] sm:$0xf]
  %v784 = vld [vmem:[%s14 + $0x8] sm:$0xf]
  %v785 = vld [vmem:[%s14 + $0xc] sm:$0xf]
  %v786 = vld [vmem:[%s15] sm:$0x1]
  %v788 = vperm.slane %v786, 0
  %v794 = vunpack.c.l.b16 %v782
  %v795 = vunpack.c.l.b16 %v783
  %v796 = vunpack.c.l.b16 %v784
  %v797 = vunpack.c.l.b16 %v785
  %v798 = vpack.c.b16 %v795, %v794
  %v799 = vpack.c.b16 %v797, %v796
  %v803 = vsel %vm81, %v781, 0
  %805 = vmatpush.bf16.msra.mxu0 0
  %806 = vmatpush.bf16.msra.mxu0 0
  %807 = vmatpush.bf16.msra.mxu0 0
  %808 = vmatpush.bf16.msra.mxu0 0
  %809 = vmatpush.bf16.msra.mxu0 0
  %810 = vmatpush.bf16.msra.mxu0 0
  %811 = vmatpush.bf16.msra.mxu0 %v799
  %812 = vmatpush.bf16.msra.mxu0 %v798
  %813 = vmatmul.bf16.gmra.mxu0 %v803
  %v814 = vpop.f32.mrf.mxu0
  %v815 = vadd.f32 %v788, %v814
  %v816 = vpop.f32.mrf.mxu0
  %v817 = vadd.f32 %v788, %v816
  %818 = vdwg.mxu0
  %v819 = vmul.f32 %v815, 1.702
  %v820 = vmul.f32 %v817, 1.702
  %v821 = vxor.u32 %v819, 2147483648
  %v822 = vxor.u32 %v820, 2147483648
  %v823 = vmul.f32 %v821, 1.442695
  %v824 = vpow.pop %v823
  %v825 = vmul.f32 %v822, 1.442695
  %v826 = vpow.pop %v825
  %v827 = vadd.f32 %v824, 1.0
  %v828 = vadd.f32 %v826, 1.0
  %v829 = vrcp.pop %v827
  %v830 = vmul.f32 %v827, %v829
  %v831 = vsub.f32 1.0, %v830
  %v832 = vmul.f32 %v829, %v831
  %v833 = vadd.f32 %v829, %v832
  %vm834 = vweird.f32 %v827
  %vm835 = vweird.f32 %v829
  %vm836 = vmor %vm834, %vm835
  %v837 = vsel %vm836, %v829, %v833
  %v838 = vand.u32 2147483647, %v827
  %vm839 = vcmp.eq.f32.partialorder %v838, 8.507059e+37
  %v840 = vand.u32 %v827, 2147483648
  %v841 = vor.u32 1.1754944e-38, %v840
  %v842 = vsel %vm839, %v841, %v837
  %v843 = vmul.f32 1.0, %v842
  %v844 = vrcp.pop %v828
  %v845 = vmul.f32 %v828, %v844
  %v846 = vsub.f32 1.0, %v845
  %v847 = vmul.f32 %v844, %v846
  %v848 = vadd.f32 %v844, %v847
  %vm849 = vweird.f32 %v828
  %vm850 = vweird.f32 %v844
  %vm851 = vmor %vm849, %vm850
  %v852 = vsel %vm851, %v844, %v848
  %v853 = vand.u32 2147483647, %v828
  %vm854 = vcmp.eq.f32.partialorder %v853, 8.507059e+37
  %v855 = vand.u32 %v828, 2147483648
  %v856 = vor.u32 1.1754944e-38, %v855
  %v857 = vsel %vm854, %v856, %v852
  %v858 = vmul.f32 1.0, %v857
  %v859 = vmul.f32 %v815, %v843
  %v860 = vmul.f32 %v817, %v858
  %v861 = vpack.c.bf16 %v860, %v859
  %v862 = vld [vmem:[%s16] sm:$0xf]
  %v863 = vld [vmem:[%s16 + $0x4] sm:$0xf]
  %v864 = vld [vmem:[%s16 + $0x8] sm:$0xf]
  %v865 = vld [vmem:[%s16 + $0xc] sm:$0xf]
  %v866 = vld [vmem:[%s16 + $0x10] sm:$0xf]
  %v867 = vld [vmem:[%s16 + $0x14] sm:$0xf]
  %v868 = vld [vmem:[%s16 + $0x18] sm:$0xf]
  %v869 = vld [vmem:[%s16 + $0x1c] sm:$0xf]
  %v870 = vld [vmem:[%s16 + $0x20] sm:$0xf]
  %v871 = vld [vmem:[%s16 + $0x24] sm:$0xf]
  %v872 = vld [vmem:[%s16 + $0x28] sm:$0xf]
  %v873 = vld [vmem:[%s16 + $0x2c] sm:$0xf]
  %v874 = vld [vmem:[%s16 + $0x30] sm:$0xf]
  %v875 = vld [vmem:[%s16 + $0x34] sm:$0xf]
  %v876 = vld [vmem:[%s16 + $0x38] sm:$0xf]
  %v877 = vld [vmem:[%s16 + $0x3c] sm:$0xf]
  %v894 = vunpack.c.l.b16 %v862
  %v895 = vunpack.c.l.b16 %v863
  %v896 = vunpack.c.l.b16 %v864
  %v897 = vunpack.c.l.b16 %v865
  %v898 = vunpack.c.l.b16 %v866
  %v899 = vunpack.c.l.b16 %v867
  %v900 = vunpack.c.l.b16 %v868
  %v901 = vunpack.c.l.b16 %v869
  %v902 = vunpack.c.l.b16 %v870
  %v903 = vunpack.c.l.b16 %v871
  %v904 = vunpack.c.l.b16 %v872
  %v905 = vunpack.c.l.b16 %v873
  %v906 = vunpack.c.l.b16 %v874
  %v907 = vunpack.c.l.b16 %v875
  %v908 = vunpack.c.l.b16 %v876
  %v909 = vunpack.c.l.b16 %v877
  %v910 = vpack.c.b16 %v895, %v894
  %v911 = vpack.c.b16 %v897, %v896
  %v912 = vpack.c.b16 %v899, %v898
  %v913 = vpack.c.b16 %v901, %v900
  %v914 = vpack.c.b16 %v903, %v902
  %v915 = vpack.c.b16 %v905, %v904
  %v916 = vpack.c.b16 %v907, %v906
  %v917 = vpack.c.b16 %v909, %v908
  %926 = vmatpush.bf16.msra.mxu0 %v917
  %927 = vmatpush.bf16.msra.mxu0 %v916
  %928 = vmatpush.bf16.msra.mxu0 %v915
  %929 = vmatpush.bf16.msra.mxu0 %v914
  %930 = vmatpush.bf16.msra.mxu0 %v913
  %931 = vmatpush.bf16.msra.mxu0 %v912
  %932 = vmatpush.bf16.msra.mxu0 %v911
  %933 = vmatpush.bf16.msra.mxu0 %v910
  %934 = vmatmul.bf16.gmra.mxu0 %v861
  %v935 = vpop.f32.mrf.mxu0
  %v936 = vadd.f32 0.0, %v935
  %v937 = vpop.f32.mrf.mxu0
  %v938 = vadd.f32 0.0, %v937
  %939 = vdwg.mxu0
  %v940 = vadd.f32 %v723, %v936
  %v941 = vadd.f32 %v724, %v938
  %v942 = vld [vmem:[%s17] sm:$0x1]
  %v944 = vperm.slane %v942, 0
  %v946 = vadd.f32 %v940, %v944
  %v947 = vadd.f32 %v941, %v944
  %s948 = scalar_lea.vmem %s6, 1
  %v949 = vld [vmem:[%s948] sm:$0x1]
  %s950 = scalar_lea.vmem %s7, 1
  %v951 = vld [vmem:[%s950] sm:$0x1]
  %v952 = vsel %vm81, %v946, 0.0
  %953 = vadd.xlane.f32.xlu0 %v952
  %v954 = vpop.xlane.xlu0 %953
  %v955 = vsel %vm81, %v947, 0.0
  %956 = vadd.xlane.f32.xlu0 %v955
  %v957 = vpop.xlane.xlu0 %956
  %v958 = vmul.f32 %v954, %v94
  %v959 = vmul.f32 %v957, %v94
  %v960 = vsub.f32 %v946, %v958
  %v961 = vsub.f32 %v947, %v959
  %v962 = vmul.f32 %v960, %v960
  %v963 = vmul.f32 %v961, %v961
  %v964 = vsel %vm81, %v962, 0.0
  %965 = vadd.xlane.f32.xlu0 %v964
  %v966 = vpop.xlane.xlu0 %965
  %v967 = vsel %vm81, %v963, 0.0
  %968 = vadd.xlane.f32.xlu0 %v967
  %v969 = vpop.xlane.xlu0 %968
  %v970 = vmul.f32 %v966, %v94
  %v971 = vmul.f32 %v969, %v94
  %v972 = vadd.f32 %v970, 1e-05
  %v973 = vadd.f32 %v971, 1e-05
  %v974 = vrsqrt.pop %v972
  %v975 = vmul.f32 %v974, %v972
  %v976 = vmul.f32 %v975, %v974
  %v977 = vmul.f32 0.5, %v976
  %v978 = vsub.f32 1.5, %v977
  %v979 = vmul.f32 %v974, %v978
  %vm980 = vweird.f32 %v972
  %vm981 = vweird.f32 %v974
  %vm982 = vmor %vm980, %vm981
  %v983 = vsel %vm982, %v974, %v979
  %v984 = vrsqrt.pop %v973
  %v985 = vmul.f32 %v984, %v973
  %v986 = vmul.f32 %v985, %v984
  %v987 = vmul.f32 0.5, %v986
  %v988 = vsub.f32 1.5, %v987
  %v989 = vmul.f32 %v984, %v988
  %vm990 = vweird.f32 %v973
  %vm991 = vweird.f32 %v984
  %vm992 = vmor %vm990, %vm991
  %v993 = vsel %vm992, %v984, %v989
  %v994 = vmul.f32 %v960, %v983
  %v995 = vmul.f32 %v961, %v993
  %v997 = vperm.slane %v949, 0
  %v999 = vmul.f32 %v994, %v997
  %v1000 = vmul.f32 %v995, %v997
  %v1002 = vperm.slane %v951, 0
  %v1004 = vadd.f32 %v999, %v1002
  %v1005 = vadd.f32 %v1000, %v1002
  %v1006 = vpack.c.bf16 %v1005, %v1004
  %s1007 = scalar_lea.vmem %s8, 16
  %v1008 = vld [vmem:[%s1007] sm:$0xf]
  %v1009 = vld [vmem:[%s1007 + $0x4] sm:$0xf]
  %v1010 = vld [vmem:[%s1007 + $0x8] sm:$0xf]
  %v1011 = vld [vmem:[%s1007 + $0xc] sm:$0xf]
  %s1012 = scalar_lea.vmem %s9, 1
  %v1013 = vld [vmem:[%s1012] sm:$0x1]
  %v1015 = vperm.slane %v1013, 0
  %v1021 = vunpack.c.l.b16 %v1008
  %v1022 = vunpack.c.l.b16 %v1009
  %v1023 = vunpack.c.l.b16 %v1010
  %v1024 = vunpack.c.l.b16 %v1011
  %v1025 = vpack.c.b16 %v1022, %v1021
  %v1026 = vpack.c.b16 %v1024, %v1023
  %v1030 = vsel %vm81, %v1006, 0
  %1032 = vmatpush.bf16.msra.mxu0 0
  %1033 = vmatpush.bf16.msra.mxu0 0
  %1034 = vmatpush.bf16.msra.mxu0 0
  %1035 = vmatpush.bf16.msra.mxu0 0
  %1036 = vmatpush.bf16.msra.mxu0 0
  %1037 = vmatpush.bf16.msra.mxu0 0
  %1038 = vmatpush.bf16.msra.mxu0 %v1026
  %1039 = vmatpush.bf16.msra.mxu0 %v1025
  %1040 = vmatmul.bf16.gmra.mxu0 %v1030
  %v1041 = vpop.f32.mrf.mxu0
  %v1042 = vadd.f32 %v1015, %v1041
  %v1043 = vpop.f32.mrf.mxu0
  %v1044 = vadd.f32 %v1015, %v1043
  %1045 = vdwg.mxu0
  %v1046 = vpack.c.bf16 %v1042, %v1042
  %v1047 = vpack.c.bf16 %v1044, %v1044
  %v1049 = vunpack.c.l.b16 %v1046
  %v1050 = vpack.c.b16 %v1049, %v1049
  %1051 = vrot.lane.b32.xlu0 %v1050, 96
  %v1052 = vpop.permute.xlu0 %1051
  %v1054 = vsel %vm188, %v1046, 0
  %v1057 = vsel %vm188, %v1052, 0
  %1059 = vmatpush.bf16.xpose.msra.mxu0 0
  %1060 = vmatpush.bf16.xpose.msra.mxu0 0
  %1061 = vmatpush.bf16.xpose.msra.mxu0 0
  %1062 = vmatpush.bf16.xpose.msra.mxu0 0
  %1063 = vmatpush.bf16.xpose.msra.mxu0 0
  %1064 = vmatpush.bf16.xpose.msra.mxu0 0
  %1065 = vmatpush.bf16.xpose.msra.mxu0 0
  %1066 = vmatpush.bf16.xpose.msra.mxu0 %v1057
  %1067 = vmatmul.bf16.gmra.mxu0 %v1054
  %v1068 = vpop.f32.mrf.mxu0
  %v1069 = vadd.f32 0.0, %v1068
  %v1070 = vpop.f32.mrf.mxu0
  %1071 = vdwg.mxu0
  %v1073 = vunpack.c.l.b16 %v1047
  %v1074 = vpack.c.b16 %v1073, %v1073
  %1075 = vrot.lane.b32.xlu0 %v1074, 96
  %v1076 = vpop.permute.xlu0 %1075
  %v1078 = vsel %vm188, %v1047, 0
  %v1081 = vsel %vm188, %v1076, 0
  %1083 = vmatpush.bf16.xpose.msra.mxu0 0
  %1084 = vmatpush.bf16.xpose.msra.mxu0 0
  %1085 = vmatpush.bf16.xpose.msra.mxu0 0
  %1086 = vmatpush.bf16.xpose.msra.mxu0 0
  %1087 = vmatpush.bf16.xpose.msra.mxu0 0
  %1088 = vmatpush.bf16.xpose.msra.mxu0 0
  %1089 = vmatpush.bf16.xpose.msra.mxu0 0
  %1090 = vmatpush.bf16.xpose.msra.mxu0 %v1081
  %1091 = vmatmul.bf16.gmra.mxu0 %v1078
  %v1092 = vpop.f32.mrf.mxu0
  %v1093 = vadd.f32 0.0, %v1092
  %v1094 = vpop.f32.mrf.mxu0
  %1095 = vdwg.mxu0
  %v1096 = vmul.f32 %v1069, 0.35355338
  %v1097 = vmul.f32 %v1093, 0.35355338
  %v1098 = vadd.f32 %v1096, %v78
  %v1099 = vadd.f32 %v1097, %v78
  %v1100 = vsel %vm188, %v1098, -inf
  %1101 = vmax.xlane.f32.xlu0 %v1100
  %v1102 = vpop.xlane.xlu0 %1101
  %v1103 = vsel %vm188, %v1099, -inf
  %1104 = vmax.xlane.f32.xlu0 %v1103
  %v1105 = vpop.xlane.xlu0 %1104
  %v1106 = vsub.f32 %v1098, %v1102
  %v1107 = vsub.f32 %v1099, %v1105
  %v1108 = vmul.f32 %v1106, 1.442695
  %v1109 = vpow.pop %v1108
  %v1110 = vmul.f32 %v1107, 1.442695
  %v1111 = vpow.pop %v1110
  %v1112 = vsel %vm188, %v1109, 0.0
  %1113 = vadd.xlane.f32.xlu0 %v1112
  %v1114 = vpop.xlane.xlu0 %1113
  %v1115 = vsel %vm188, %v1111, 0.0
  %1116 = vadd.xlane.f32.xlu0 %v1115
  %v1117 = vpop.xlane.xlu0 %1116
  %v1118 = vrcp.pop %v1114
  %v1119 = vrcp.pop %v1117
  %v1120 = vmul.f32 %v1109, %v1118
  %v1121 = vmul.f32 %v1111, %v1119
  %v1122 = vpack.c.bf16 %v1120, %v1120
  %v1123 = vpack.c.bf16 %v1121, %v1121
  %1124 = vrot.lane.b32.xlu0 %v1050, 64
  %v1125 = vpop.permute.xlu0 %1124
  %v1127 = vsel %vm188, %v1122, 0
  %v1130 = vsel %vm265, %v1125, 0
  %1132 = vmatpush.bf16.msra.mxu0 0
  %1133 = vmatpush.bf16.msra.mxu0 0
  %1134 = vmatpush.bf16.msra.mxu0 0
  %1135 = vmatpush.bf16.msra.mxu0 0
  %1136 = vmatpush.bf16.msra.mxu0 0
  %1137 = vmatpush.bf16.msra.mxu0 0
  %1138 = vmatpush.bf16.msra.mxu0 0
  %1139 = vmatpush.bf16.msra.mxu0 %v1130
  %1140 = vmatmul.bf16.gmra.mxu0 %v1127
  %v1141 = vpop.f32.mrf.mxu0
  %v1142 = vadd.f32 0.0, %v1141
  %v1143 = vpop.f32.mrf.mxu0
  %1144 = vdwg.mxu0
  %1145 = vrot.lane.b32.xlu0 %v1074, 64
  %v1146 = vpop.permute.xlu0 %1145
  %v1148 = vsel %vm188, %v1123, 0
  %v1151 = vsel %vm265, %v1146, 0
  %1153 = vmatpush.bf16.msra.mxu0 0
  %1154 = vmatpush.bf16.msra.mxu0 0
  %1155 = vmatpush.bf16.msra.mxu0 0
  %1156 = vmatpush.bf16.msra.mxu0 0
  %1157 = vmatpush.bf16.msra.mxu0 0
  %1158 = vmatpush.bf16.msra.mxu0 0
  %1159 = vmatpush.bf16.msra.mxu0 0
  %1160 = vmatpush.bf16.msra.mxu0 %v1151
  %1161 = vmatmul.bf16.gmra.mxu0 %v1148
  %v1162 = vpop.f32.mrf.mxu0
  %v1163 = vadd.f32 0.0, %v1162
  %v1164 = vpop.f32.mrf.mxu0
  %1165 = vdwg.mxu0
  %1166 = vrot.lane.b32.xlu0 %v1050, 120
  %v1167 = vpop.permute.xlu0 %1166
  %1168 = vrot.lane.b32.xlu0 %v1050, 88
  %v1169 = vpop.permute.xlu0 %1168
  %v1171 = vsel %vm188, %v1167, 0
  %v1174 = vsel %vm188, %v1169, 0
  %1176 = vmatpush.bf16.xpose.msra.mxu0 0
  %1177 = vmatpush.bf16.xpose.msra.mxu0 0
  %1178 = vmatpush.bf16.xpose.msra.mxu0 0
  %1179 = vmatpush.bf16.xpose.msra.mxu0 0
  %1180 = vmatpush.bf16.xpose.msra.mxu0 0
  %1181 = vmatpush.bf16.xpose.msra.mxu0 0
  %1182 = vmatpush.bf16.xpose.msra.mxu0 0
  %1183 = vmatpush.bf16.xpose.msra.mxu0 %v1174
  %1184 = vmatmul.bf16.gmra.mxu0 %v1171
  %v1185 = vpop.f32.mrf.mxu0
  %v1186 = vadd.f32 0.0, %v1185
  %v1187 = vpop.f32.mrf.mxu0
  %1188 = vdwg.mxu0
  %1189 = vrot.lane.b32.xlu0 %v1074, 120
  %v1190 = vpop.permute.xlu0 %1189
  %1191 = vrot.lane.b32.xlu0 %v1074, 88
  %v1192 = vpop.permute.xlu0 %1191
  %v1194 = vsel %vm188, %v1190, 0
  %v1197 = vsel %vm188, %v1192, 0
  %1199 = vmatpush.bf16.xpose.msra.mxu0 0
  %1200 = vmatpush.bf16.xpose.msra.mxu0 0
  %1201 = vmatpush.bf16.xpose.msra.mxu0 0
  %1202 = vmatpush.bf16.xpose.msra.mxu0 0
  %1203 = vmatpush.bf16.xpose.msra.mxu0 0
  %1204 = vmatpush.bf16.xpose.msra.mxu0 0
  %1205 = vmatpush.bf16.xpose.msra.mxu0 0
  %1206 = vmatpush.bf16.xpose.msra.mxu0 %v1197
  %1207 = vmatmul.bf16.gmra.mxu0 %v1194
  %v1208 = vpop.f32.mrf.mxu0
  %v1209 = vadd.f32 0.0, %v1208
  %v1210 = vpop.f32.mrf.mxu0
  %1211 = vdwg.mxu0
  %v1212 = vmul.f32 %v1186, 0.35355338
  %v1213 = vmul.f32 %v1209, 0.35355338
  %v1214 = vadd.f32 %v1212, %v78
  %v1215 = vadd.f32 %v1213, %v78
  %v1216 = vsel %vm188, %v1214, -inf
  %1217 = vmax.xlane.f32.xlu0 %v1216
  %v1218 = vpop.xlane.xlu0 %1217
  %v1219 = vsel %vm188, %v1215, -inf
  %1220 = vmax.xlane.f32.xlu0 %v1219
  %v1221 = vpop.xlane.xlu0 %1220
  %v1222 = vsub.f32 %v1214, %v1218
  %v1223 = vsub.f32 %v1215, %v1221
  %v1224 = vmul.f32 %v1222, 1.442695
  %v1225 = vpow.pop %v1224
  %v1226 = vmul.f32 %v1223, 1.442695
  %v1227 = vpow.pop %v1226
  %v1228 = vsel %vm188, %v1225, 0.0
  %1229 = vadd.xlane.f32.xlu0 %v1228
  %v1230 = vpop.xlane.xlu0 %1229
  %v1231 = vsel %vm188, %v1227, 0.0
  %1232 = vadd.xlane.f32.xlu0 %v1231
  %v1233 = vpop.xlane.xlu0 %1232
  %v1234 = vrcp.pop %v1230
  %v1235 = vrcp.pop %v1233
  %v1236 = vmul.f32 %v1225, %v1234
  %v1237 = vmul.f32 %v1227, %v1235
  %v1238 = vpack.c.bf16 %v1236, %v1236
  %v1239 = vpack.c.bf16 %v1237, %v1237
  %1240 = vrot.lane.b32.xlu0 %v1050, 56
  %v1241 = vpop.permute.xlu0 %1240
  %v1243 = vsel %vm188, %v1238, 0
  %v1246 = vsel %vm265, %v1241, 0
  %1248 = vmatpush.bf16.msra.mxu0 0
  %1249 = vmatpush.bf16.msra.mxu0 0
  %1250 = vmatpush.bf16.msra.mxu0 0
  %1251 = vmatpush.bf16.msra.mxu0 0
  %1252 = vmatpush.bf16.msra.mxu0 0
  %1253 = vmatpush.bf16.msra.mxu0 0
  %1254 = vmatpush.bf16.msra.mxu0 0
  %1255 = vmatpush.bf16.msra.mxu0 %v1246
  %1256 = vmatmul.bf16.gmra.mxu0 %v1243
  %v1257 = vpop.f32.mrf.mxu0
  %v1258 = vadd.f32 0.0, %v1257
  %v1259 = vpop.f32.mrf.mxu0
  %1260 = vdwg.mxu0
  %1261 = vrot.lane.b32.xlu0 %v1074, 56
  %v1262 = vpop.permute.xlu0 %1261
  %v1264 = vsel %vm188, %v1239, 0
  %v1267 = vsel %vm265, %v1262, 0
  %1269 = vmatpush.bf16.msra.mxu0 0
  %1270 = vmatpush.bf16.msra.mxu0 0
  %1271 = vmatpush.bf16.msra.mxu0 0
  %1272 = vmatpush.bf16.msra.mxu0 0
  %1273 = vmatpush.bf16.msra.mxu0 0
  %1274 = vmatpush.bf16.msra.mxu0 0
  %1275 = vmatpush.bf16.msra.mxu0 0
  %1276 = vmatpush.bf16.msra.mxu0 %v1267
  %1277 = vmatmul.bf16.gmra.mxu0 %v1264
  %v1278 = vpop.f32.mrf.mxu0
  %v1279 = vadd.f32 0.0, %v1278
  %v1280 = vpop.f32.mrf.mxu0
  %1281 = vdwg.mxu0
  %1282 = vrot.lane.b32.xlu0 %v1050, 112
  %v1283 = vpop.permute.xlu0 %1282
  %1284 = vrot.lane.b32.xlu0 %v1050, 80
  %v1285 = vpop.permute.xlu0 %1284
  %v1287 = vsel %vm188, %v1283, 0
  %v1290 = vsel %vm188, %v1285, 0
  %1292 = vmatpush.bf16.xpose.msra.mxu0 0
  %1293 = vmatpush.bf16.xpose.msra.mxu0 0
  %1294 = vmatpush.bf16.xpose.msra.mxu0 0
  %1295 = vmatpush.bf16.xpose.msra.mxu0 0
  %1296 = vmatpush.bf16.xpose.msra.mxu0 0
  %1297 = vmatpush.bf16.xpose.msra.mxu0 0
  %1298 = vmatpush.bf16.xpose.msra.mxu0 0
  %1299 = vmatpush.bf16.xpose.msra.mxu0 %v1290
  %1300 = vmatmul.bf16.gmra.mxu0 %v1287
  %v1301 = vpop.f32.mrf.mxu0
  %v1302 = vadd.f32 0.0, %v1301
  %v1303 = vpop.f32.mrf.mxu0
  %1304 = vdwg.mxu0
  %1305 = vrot.lane.b32.xlu0 %v1074, 112
  %v1306 = vpop.permute.xlu0 %1305
  %1307 = vrot.lane.b32.xlu0 %v1074, 80
  %v1308 = vpop.permute.xlu0 %1307
  %v1310 = vsel %vm188, %v1306, 0
  %v1313 = vsel %vm188, %v1308, 0
  %1315 = vmatpush.bf16.xpose.msra.mxu0 0
  %1316 = vmatpush.bf16.xpose.msra.mxu0 0
  %1317 = vmatpush.bf16.xpose.msra.mxu0 0
  %1318 = vmatpush.bf16.xpose.msra.mxu0 0
  %1319 = vmatpush.bf16.xpose.msra.mxu0 0
  %1320 = vmatpush.bf16.xpose.msra.mxu0 0
  %1321 = vmatpush.bf16.xpose.msra.mxu0 0
  %1322 = vmatpush.bf16.xpose.msra.mxu0 %v1313
  %1323 = vmatmul.bf16.gmra.mxu0 %v1310
  %v1324 = vpop.f32.mrf.mxu0
  %v1325 = vadd.f32 0.0, %v1324
  %v1326 = vpop.f32.mrf.mxu0
  %1327 = vdwg.mxu0
  %v1328 = vmul.f32 %v1302, 0.35355338
  %v1329 = vmul.f32 %v1325, 0.35355338
  %v1330 = vadd.f32 %v1328, %v78
  %v1331 = vadd.f32 %v1329, %v78
  %v1332 = vsel %vm188, %v1330, -inf
  %1333 = vmax.xlane.f32.xlu0 %v1332
  %v1334 = vpop.xlane.xlu0 %1333
  %v1335 = vsel %vm188, %v1331, -inf
  %1336 = vmax.xlane.f32.xlu0 %v1335
  %v1337 = vpop.xlane.xlu0 %1336
  %v1338 = vsub.f32 %v1330, %v1334
  %v1339 = vsub.f32 %v1331, %v1337
  %v1340 = vmul.f32 %v1338, 1.442695
  %v1341 = vpow.pop %v1340
  %v1342 = vmul.f32 %v1339, 1.442695
  %v1343 = vpow.pop %v1342
  %v1344 = vsel %vm188, %v1341, 0.0
  %1345 = vadd.xlane.f32.xlu0 %v1344
  %v1346 = vpop.xlane.xlu0 %1345
  %v1347 = vsel %vm188, %v1343, 0.0
  %1348 = vadd.xlane.f32.xlu0 %v1347
  %v1349 = vpop.xlane.xlu0 %1348
  %v1350 = vrcp.pop %v1346
  %v1351 = vrcp.pop %v1349
  %v1352 = vmul.f32 %v1341, %v1350
  %v1353 = vmul.f32 %v1343, %v1351
  %v1354 = vpack.c.bf16 %v1352, %v1352
  %v1355 = vpack.c.bf16 %v1353, %v1353
  %1356 = vrot.lane.b32.xlu0 %v1050, 48
  %v1357 = vpop.permute.xlu0 %1356
  %v1359 = vsel %vm188, %v1354, 0
  %v1362 = vsel %vm265, %v1357, 0
  %1364 = vmatpush.bf16.msra.mxu0 0
  %1365 = vmatpush.bf16.msra.mxu0 0
  %1366 = vmatpush.bf16.msra.mxu0 0
  %1367 = vmatpush.bf16.msra.mxu0 0
  %1368 = vmatpush.bf16.msra.mxu0 0
  %1369 = vmatpush.bf16.msra.mxu0 0
  %1370 = vmatpush.bf16.msra.mxu0 0
  %1371 = vmatpush.bf16.msra.mxu0 %v1362
  %1372 = vmatmul.bf16.gmra.mxu0 %v1359
  %v1373 = vpop.f32.mrf.mxu0
  %v1374 = vadd.f32 0.0, %v1373
  %v1375 = vpop.f32.mrf.mxu0
  %1376 = vdwg.mxu0
  %1377 = vrot.lane.b32.xlu0 %v1074, 48
  %v1378 = vpop.permute.xlu0 %1377
  %v1380 = vsel %vm188, %v1355, 0
  %v1383 = vsel %vm265, %v1378, 0
  %1385 = vmatpush.bf16.msra.mxu0 0
  %1386 = vmatpush.bf16.msra.mxu0 0
  %1387 = vmatpush.bf16.msra.mxu0 0
  %1388 = vmatpush.bf16.msra.mxu0 0
  %1389 = vmatpush.bf16.msra.mxu0 0
  %1390 = vmatpush.bf16.msra.mxu0 0
  %1391 = vmatpush.bf16.msra.mxu0 0
  %1392 = vmatpush.bf16.msra.mxu0 %v1383
  %1393 = vmatmul.bf16.gmra.mxu0 %v1380
  %v1394 = vpop.f32.mrf.mxu0
  %v1395 = vadd.f32 0.0, %v1394
  %v1396 = vpop.f32.mrf.mxu0
  %1397 = vdwg.mxu0
  %1398 = vrot.lane.b32.xlu0 %v1050, 104
  %v1399 = vpop.permute.xlu0 %1398
  %1400 = vrot.lane.b32.xlu0 %v1050, 72
  %v1401 = vpop.permute.xlu0 %1400
  %v1403 = vsel %vm188, %v1399, 0
  %v1406 = vsel %vm188, %v1401, 0
  %1408 = vmatpush.bf16.xpose.msra.mxu0 0
  %1409 = vmatpush.bf16.xpose.msra.mxu0 0
  %1410 = vmatpush.bf16.xpose.msra.mxu0 0
  %1411 = vmatpush.bf16.xpose.msra.mxu0 0
  %1412 = vmatpush.bf16.xpose.msra.mxu0 0
  %1413 = vmatpush.bf16.xpose.msra.mxu0 0
  %1414 = vmatpush.bf16.xpose.msra.mxu0 0
  %1415 = vmatpush.bf16.xpose.msra.mxu0 %v1406
  %1416 = vmatmul.bf16.gmra.mxu0 %v1403
  %v1417 = vpop.f32.mrf.mxu0
  %v1418 = vadd.f32 0.0, %v1417
  %v1419 = vpop.f32.mrf.mxu0
  %1420 = vdwg.mxu0
  %1421 = vrot.lane.b32.xlu0 %v1074, 104
  %v1422 = vpop.permute.xlu0 %1421
  %1423 = vrot.lane.b32.xlu0 %v1074, 72
  %v1424 = vpop.permute.xlu0 %1423
  %v1426 = vsel %vm188, %v1422, 0
  %v1429 = vsel %vm188, %v1424, 0
  %1431 = vmatpush.bf16.xpose.msra.mxu0 0
  %1432 = vmatpush.bf16.xpose.msra.mxu0 0
  %1433 = vmatpush.bf16.xpose.msra.mxu0 0
  %1434 = vmatpush.bf16.xpose.msra.mxu0 0
  %1435 = vmatpush.bf16.xpose.msra.mxu0 0
  %1436 = vmatpush.bf16.xpose.msra.mxu0 0
  %1437 = vmatpush.bf16.xpose.msra.mxu0 0
  %1438 = vmatpush.bf16.xpose.msra.mxu0 %v1429
  %1439 = vmatmul.bf16.gmra.mxu0 %v1426
  %v1440 = vpop.f32.mrf.mxu0
  %v1441 = vadd.f32 0.0, %v1440
  %v1442 = vpop.f32.mrf.mxu0
  %1443 = vdwg.mxu0
  %v1444 = vmul.f32 %v1418, 0.35355338
  %v1445 = vmul.f32 %v1441, 0.35355338
  %v1446 = vadd.f32 %v1444, %v78
  %v1447 = vadd.f32 %v1445, %v78
  %v1448 = vsel %vm188, %v1446, -inf
  %1449 = vmax.xlane.f32.xlu0 %v1448
  %v1450 = vpop.xlane.xlu0 %1449
  %v1451 = vsel %vm188, %v1447, -inf
  %1452 = vmax.xlane.f32.xlu0 %v1451
  %v1453 = vpop.xlane.xlu0 %1452
  %v1454 = vsub.f32 %v1446, %v1450
  %v1455 = vsub.f32 %v1447, %v1453
  %v1456 = vmul.f32 %v1454, 1.442695
  %v1457 = vpow.pop %v1456
  %v1458 = vmul.f32 %v1455, 1.442695
  %v1459 = vpow.pop %v1458
  %v1460 = vsel %vm188, %v1457, 0.0
  %1461 = vadd.xlane.f32.xlu0 %v1460
  %v1462 = vpop.xlane.xlu0 %1461
  %v1463 = vsel %vm188, %v1459, 0.0
  %1464 = vadd.xlane.f32.xlu0 %v1463
  %v1465 = vpop.xlane.xlu0 %1464
  %v1466 = vrcp.pop %v1462
  %v1467 = vrcp.pop %v1465
  %v1468 = vmul.f32 %v1457, %v1466
  %v1469 = vmul.f32 %v1459, %v1467
  %v1470 = vpack.c.bf16 %v1468, %v1468
  %v1471 = vpack.c.bf16 %v1469, %v1469
  %1472 = vrot.lane.b32.xlu0 %v1050, 40
  %v1473 = vpop.permute.xlu0 %1472
  %v1475 = vsel %vm188, %v1470, 0
  %v1478 = vsel %vm265, %v1473, 0
  %1480 = vmatpush.bf16.msra.mxu0 0
  %1481 = vmatpush.bf16.msra.mxu0 0
  %1482 = vmatpush.bf16.msra.mxu0 0
  %1483 = vmatpush.bf16.msra.mxu0 0
  %1484 = vmatpush.bf16.msra.mxu0 0
  %1485 = vmatpush.bf16.msra.mxu0 0
  %1486 = vmatpush.bf16.msra.mxu0 0
  %1487 = vmatpush.bf16.msra.mxu0 %v1478
  %1488 = vmatmul.bf16.gmra.mxu0 %v1475
  %v1489 = vpop.f32.mrf.mxu0
  %v1490 = vadd.f32 0.0, %v1489
  %v1491 = vpop.f32.mrf.mxu0
  %1492 = vdwg.mxu0
  %1493 = vrot.lane.b32.xlu0 %v1074, 40
  %v1494 = vpop.permute.xlu0 %1493
  %v1496 = vsel %vm188, %v1471, 0
  %v1499 = vsel %vm265, %v1494, 0
  %1501 = vmatpush.bf16.msra.mxu0 0
  %1502 = vmatpush.bf16.msra.mxu0 0
  %1503 = vmatpush.bf16.msra.mxu0 0
  %1504 = vmatpush.bf16.msra.mxu0 0
  %1505 = vmatpush.bf16.msra.mxu0 0
  %1506 = vmatpush.bf16.msra.mxu0 0
  %1507 = vmatpush.bf16.msra.mxu0 0
  %1508 = vmatpush.bf16.msra.mxu0 %v1499
  %1509 = vmatmul.bf16.gmra.mxu0 %v1496
  %v1510 = vpop.f32.mrf.mxu0
  %v1511 = vadd.f32 0.0, %v1510
  %v1512 = vpop.f32.mrf.mxu0
  %1513 = vdwg.mxu0
  %1516 = vrot.lane.b32.xlu0 %v1258, 8
  %v1517 = vpop.permute.xlu0 %1516
  %1518 = vrot.lane.b32.xlu0 %v1279, 8
  %v1519 = vpop.permute.xlu0 %1518
  %1524 = vrot.lane.b32.xlu0 %v1374, 16
  %v1525 = vpop.permute.xlu0 %1524
  %1526 = vrot.lane.b32.xlu0 %v1395, 16
  %v1527 = vpop.permute.xlu0 %1526
  %1532 = vrot.lane.b32.xlu0 %v1490, 24
  %v1533 = vpop.permute.xlu0 %1532
  %1534 = vrot.lane.b32.xlu0 %v1511, 24
  %v1535 = vpop.permute.xlu0 %1534
  %v1538 = vsel %vm188, %v1142, %v1517
  %v1539 = vsel %vm188, %v1163, %v1519
  %v1540 = vsel %vm677, %v1538, %v1525
  %v1541 = vsel %vm677, %v1539, %v1527
  %v1542 = vsel %vm680, %v1540, %v1533
  %v1543 = vsel %vm680, %v1541, %v1535
  %v1544 = vpack.c.bf16 %v1543, %v1542
  %s1545 = scalar_lea.vmem %s10, 16
  %v1546 = vld [vmem:[%s1545] sm:$0xf]
  %v1547 = vld [vmem:[%s1545 + $0x4] sm:$0xf]
  %v1548 = vld [vmem:[%s1545 + $0x8] sm:$0xf]
  %v1549 = vld [vmem:[%s1545 + $0xc] sm:$0xf]
  %v1554 = vunpack.c.l.b16 %v1546
  %v1555 = vunpack.c.l.b16 %v1547
  %v1556 = vunpack.c.l.b16 %v1548
  %v1557 = vunpack.c.l.b16 %v1549
  %v1558 = vpack.c.b16 %v1555, %v1554
  %v1559 = vpack.c.b16 %v1557, %v1556
  %v1563 = vsel %vm81, %v1544, 0
  %1565 = vmatpush.bf16.msra.mxu0 0
  %1566 = vmatpush.bf16.msra.mxu0 0
  %1567 = vmatpush.bf16.msra.mxu0 0
  %1568 = vmatpush.bf16.msra.mxu0 0
  %1569 = vmatpush.bf16.msra.mxu0 0
  %1570 = vmatpush.bf16.msra.mxu0 0
  %1571 = vmatpush.bf16.msra.mxu0 %v1559
  %1572 = vmatpush.bf16.msra.mxu0 %v1558
  %1573 = vmatmul.bf16.gmra.mxu0 %v1563
  %v1574 = vpop.f32.mrf.mxu0
  %v1575 = vadd.f32 0.0, %v1574
  %v1576 = vpop.f32.mrf.mxu0
  %v1577 = vadd.f32 0.0, %v1576
  %1578 = vdwg.mxu0
  %v1579 = vadd.f32 %v946, %v1575
  %v1580 = vadd.f32 %v947, %v1577
  %s1581 = scalar_lea.vmem %s11, 1
  %v1582 = vld [vmem:[%s1581] sm:$0x1]
  %v1584 = vperm.slane %v1582, 0
  %v1586 = vadd.f32 %v1579, %v1584
  %v1587 = vadd.f32 %v1580, %v1584
  %s1588 = scalar_lea.vmem %s12, 1
  %v1589 = vld [vmem:[%s1588] sm:$0x1]
  %s1590 = scalar_lea.vmem %s13, 1
  %v1591 = vld [vmem:[%s1590] sm:$0x1]
  %v1592 = vsel %vm81, %v1586, 0.0
  %1593 = vadd.xlane.f32.xlu0 %v1592
  %v1594 = vpop.xlane.xlu0 %1593
  %v1595 = vsel %vm81, %v1587, 0.0
  %1596 = vadd.xlane.f32.xlu0 %v1595
  %v1597 = vpop.xlane.xlu0 %1596
  %v1598 = vmul.f32 %v1594, %v94
  %v1599 = vmul.f32 %v1597, %v94
  %v1600 = vsub.f32 %v1586, %v1598
  %v1601 = vsub.f32 %v1587, %v1599
  %v1602 = vmul.f32 %v1600, %v1600
  %v1603 = vmul.f32 %v1601, %v1601
  %v1604 = vsel %vm81, %v1602, 0.0
  %1605 = vadd.xlane.f32.xlu0 %v1604
  %v1606 = vpop.xlane.xlu0 %1605
  %v1607 = vsel %vm81, %v1603, 0.0
  %1608 = vadd.xlane.f32.xlu0 %v1607
  %v1609 = vpop.xlane.xlu0 %1608
  %v1610 = vmul.f32 %v1606, %v94
  %v1611 = vmul.f32 %v1609, %v94
  %v1612 = vadd.f32 %v1610, 1e-05
  %v1613 = vadd.f32 %v1611, 1e-05
  %v1614 = vrsqrt.pop %v1612
  %v1615 = vmul.f32 %v1614, %v1612
  %v1616 = vmul.f32 %v1615, %v1614
  %v1617 = vmul.f32 0.5, %v1616
  %v1618 = vsub.f32 1.5, %v1617
  %v1619 = vmul.f32 %v1614, %v1618
  %vm1620 = vweird.f32 %v1612
  %vm1621 = vweird.f32 %v1614
  %vm1622 = vmor %vm1620, %vm1621
  %v1623 = vsel %vm1622, %v1614, %v1619
  %v1624 = vrsqrt.pop %v1613
  %v1625 = vmul.f32 %v1624, %v1613
  %v1626 = vmul.f32 %v1625, %v1624
  %v1627 = vmul.f32 0.5, %v1626
  %v1628 = vsub.f32 1.5, %v1627
  %v1629 = vmul.f32 %v1624, %v1628
  %vm1630 = vweird.f32 %v1613
  %vm1631 = vweird.f32 %v1624
  %vm1632 = vmor %vm1630, %vm1631
  %v1633 = vsel %vm1632, %v1624, %v1629
  %v1634 = vmul.f32 %v1600, %v1623
  %v1635 = vmul.f32 %v1601, %v1633
  %v1637 = vperm.slane %v1589, 0
  %v1639 = vmul.f32 %v1634, %v1637
  %v1640 = vmul.f32 %v1635, %v1637
  %v1642 = vperm.slane %v1591, 0
  %v1644 = vadd.f32 %v1639, %v1642
  %v1645 = vadd.f32 %v1640, %v1642
  %v1646 = vpack.c.bf16 %v1645, %v1644
  %s1647 = scalar_lea.vmem %s14, 16
  %v1648 = vld [vmem:[%s1647] sm:$0xf]
  %v1649 = vld [vmem:[%s1647 + $0x4] sm:$0xf]
  %v1650 = vld [vmem:[%s1647 + $0x8] sm:$0xf]
  %v1651 = vld [vmem:[%s1647 + $0xc] sm:$0xf]
  %s1652 = scalar_lea.vmem %s15, 1
  %v1653 = vld [vmem:[%s1652] sm:$0x1]
  %v1655 = vperm.slane %v1653, 0
  %v1661 = vunpack.c.l.b16 %v1648
  %v1662 = vunpack.c.l.b16 %v1649
  %v1663 = vunpack.c.l.b16 %v1650
  %v1664 = vunpack.c.l.b16 %v1651
  %v1665 = vpack.c.b16 %v1662, %v1661
  %v1666 = vpack.c.b16 %v1664, %v1663
  %v1670 = vsel %vm81, %v1646, 0
  %1672 = vmatpush.bf16.msra.mxu0 0
  %1673 = vmatpush.bf16.msra.mxu0 0
  %1674 = vmatpush.bf16.msra.mxu0 0
  %1675 = vmatpush.bf16.msra.mxu0 0
  %1676 = vmatpush.bf16.msra.mxu0 0
  %1677 = vmatpush.bf16.msra.mxu0 0
  %1678 = vmatpush.bf16.msra.mxu0 %v1666
  %1679 = vmatpush.bf16.msra.mxu0 %v1665
  %1680 = vmatmul.bf16.gmra.mxu0 %v1670
  %v1681 = vpop.f32.mrf.mxu0
  %v1682 = vadd.f32 %v1655, %v1681
  %v1683 = vpop.f32.mrf.mxu0
  %v1684 = vadd.f32 %v1655, %v1683
  %1685 = vdwg.mxu0
  %v1686 = vmul.f32 %v1682, 1.702
  %v1687 = vmul.f32 %v1684, 1.702
  %v1688 = vxor.u32 %v1686, 2147483648
  %v1689 = vxor.u32 %v1687, 2147483648
  %v1690 = vmul.f32 %v1688, 1.442695
  %v1691 = vpow.pop %v1690
  %v1692 = vmul.f32 %v1689, 1.442695
  %v1693 = vpow.pop %v1692
  %v1694 = vadd.f32 %v1691, 1.0
  %v1695 = vadd.f32 %v1693, 1.0
  %v1696 = vrcp.pop %v1694
  %v1697 = vmul.f32 %v1694, %v1696
  %v1698 = vsub.f32 1.0, %v1697
  %v1699 = vmul.f32 %v1696, %v1698
  %v1700 = vadd.f32 %v1696, %v1699
  %vm1701 = vweird.f32 %v1694
  %vm1702 = vweird.f32 %v1696
  %vm1703 = vmor %vm1701, %vm1702
  %v1704 = vsel %vm1703, %v1696, %v1700
  %v1705 = vand.u32 2147483647, %v1694
  %vm1706 = vcmp.eq.f32.partialorder %v1705, 8.507059e+37
  %v1707 = vand.u32 %v1694, 2147483648
  %v1708 = vor.u32 1.1754944e-38, %v1707
  %v1709 = vsel %vm1706, %v1708, %v1704
  %v1710 = vmul.f32 1.0, %v1709
  %v1711 = vrcp.pop %v1695
  %v1712 = vmul.f32 %v1695, %v1711
  %v1713 = vsub.f32 1.0, %v1712
  %v1714 = vmul.f32 %v1711, %v1713
  %v1715 = vadd.f32 %v1711, %v1714
  %vm1716 = vweird.f32 %v1695
  %vm1717 = vweird.f32 %v1711
  %vm1718 = vmor %vm1716, %vm1717
  %v1719 = vsel %vm1718, %v1711, %v1715
  %v1720 = vand.u32 2147483647, %v1695
  %vm1721 = vcmp.eq.f32.partialorder %v1720, 8.507059e+37
  %v1722 = vand.u32 %v1695, 2147483648
  %v1723 = vor.u32 1.1754944e-38, %v1722
  %v1724 = vsel %vm1721, %v1723, %v1719
  %v1725 = vmul.f32 1.0, %v1724
  %v1726 = vmul.f32 %v1682, %v1710
  %v1727 = vmul.f32 %v1684, %v1725
  %v1728 = vpack.c.bf16 %v1727, %v1726
  %s1729 = scalar_lea.vmem %s16, 64
  %v1730 = vld [vmem:[%s1729] sm:$0xf]
  %v1731 = vld [vmem:[%s1729 + $0x4] sm:$0xf]
  %v1732 = vld [vmem:[%s1729 + $0x8] sm:$0xf]
  %v1733 = vld [vmem:[%s1729 + $0xc] sm:$0xf]
  %v1734 = vld [vmem:[%s1729 + $0x10] sm:$0xf]
  %v1735 = vld [vmem:[%s1729 + $0x14] sm:$0xf]
  %v1736 = vld [vmem:[%s1729 + $0x18] sm:$0xf]
  %v1737 = vld [vmem:[%s1729 + $0x1c] sm:$0xf]
  %v1738 = vld [vmem:[%s1729 + $0x20] sm:$0xf]
  %v1739 = vld [vmem:[%s1729 + $0x24] sm:$0xf]
  %v1740 = vld [vmem:[%s1729 + $0x28] sm:$0xf]
  %v1741 = vld [vmem:[%s1729 + $0x2c] sm:$0xf]
  %v1742 = vld [vmem:[%s1729 + $0x30] sm:$0xf]
  %v1743 = vld [vmem:[%s1729 + $0x34] sm:$0xf]
  %v1744 = vld [vmem:[%s1729 + $0x38] sm:$0xf]
  %v1745 = vld [vmem:[%s1729 + $0x3c] sm:$0xf]
  %v1762 = vunpack.c.l.b16 %v1730
  %v1763 = vunpack.c.l.b16 %v1731
  %v1764 = vunpack.c.l.b16 %v1732
  %v1765 = vunpack.c.l.b16 %v1733
  %v1766 = vunpack.c.l.b16 %v1734
  %v1767 = vunpack.c.l.b16 %v1735
  %v1768 = vunpack.c.l.b16 %v1736
  %v1769 = vunpack.c.l.b16 %v1737
  %v1770 = vunpack.c.l.b16 %v1738
  %v1771 = vunpack.c.l.b16 %v1739
  %v1772 = vunpack.c.l.b16 %v1740
  %v1773 = vunpack.c.l.b16 %v1741
  %v1774 = vunpack.c.l.b16 %v1742
  %v1775 = vunpack.c.l.b16 %v1743
  %v1776 = vunpack.c.l.b16 %v1744
  %v1777 = vunpack.c.l.b16 %v1745
  %v1778 = vpack.c.b16 %v1763, %v1762
  %v1779 = vpack.c.b16 %v1765, %v1764
  %v1780 = vpack.c.b16 %v1767, %v1766
  %v1781 = vpack.c.b16 %v1769, %v1768
  %v1782 = vpack.c.b16 %v1771, %v1770
  %v1783 = vpack.c.b16 %v1773, %v1772
  %v1784 = vpack.c.b16 %v1775, %v1774
  %v1785 = vpack.c.b16 %v1777, %v1776
  %1794 = vmatpush.bf16.msra.mxu0 %v1785
  %1795 = vmatpush.bf16.msra.mxu0 %v1784
  %1796 = vmatpush.bf16.msra.mxu0 %v1783
  %1797 = vmatpush.bf16.msra.mxu0 %v1782
  %1798 = vmatpush.bf16.msra.mxu0 %v1781
  %1799 = vmatpush.bf16.msra.mxu0 %v1780
  %1800 = vmatpush.bf16.msra.mxu0 %v1779
  %1801 = vmatpush.bf16.msra.mxu0 %v1778
  %1802 = vmatmul.bf16.gmra.mxu0 %v1728
  %v1803 = vpop.f32.mrf.mxu0
  %v1804 = vadd.f32 0.0, %v1803
  %v1805 = vpop.f32.mrf.mxu0
  %v1806 = vadd.f32 0.0, %v1805
  %1807 = vdwg.mxu0
  %v1808 = vadd.f32 %v1586, %v1804
  %v1809 = vadd.f32 %v1587, %v1806
  %s1810 = scalar_lea.vmem %s17, 1
  %v1811 = vld [vmem:[%s1810] sm:$0x1]
  %v1813 = vperm.slane %v1811, 0
  %v1815 = vadd.f32 %v1808, %v1813
  %v1816 = vadd.f32 %v1809, %v1813
  %v1817 = vld [vmem:[%s18] sm:$0x1]
  %v1818 = vld [vmem:[%s19] sm:$0x1]
  %v1819 = vsel %vm81, %v1815, 0.0
  %1820 = vadd.xlane.f32.xlu0 %v1819
  %v1821 = vpop.xlane.xlu0 %1820
  %v1822 = vsel %vm81, %v1816, 0.0
  %1823 = vadd.xlane.f32.xlu0 %v1822
  %v1824 = vpop.xlane.xlu0 %1823
  %v1825 = vmul.f32 %v1821, %v94
  %v1826 = vmul.f32 %v1824, %v94
  %v1827 = vsub.f32 %v1815, %v1825
  %v1828 = vsub.f32 %v1816, %v1826
  %v1829 = vmul.f32 %v1827, %v1827
  %v1830 = vmul.f32 %v1828, %v1828
  %v1831 = vsel %vm81, %v1829, 0.0
  %1832 = vadd.xlane.f32.xlu0 %v1831
  %v1833 = vpop.xlane.xlu0 %1832
  %v1834 = vsel %vm81, %v1830, 0.0
  %1835 = vadd.xlane.f32.xlu0 %v1834
  %v1836 = vpop.xlane.xlu0 %1835
  %v1837 = vmul.f32 %v1833, %v94
  %v1838 = vmul.f32 %v1836, %v94
  %v1839 = vadd.f32 %v1837, 1e-05
  %v1840 = vadd.f32 %v1838, 1e-05
  %v1841 = vrsqrt.pop %v1839
  %v1842 = vmul.f32 %v1841, %v1839
  %v1843 = vmul.f32 %v1842, %v1841
  %v1844 = vmul.f32 0.5, %v1843
  %v1845 = vsub.f32 1.5, %v1844
  %v1846 = vmul.f32 %v1841, %v1845
  %vm1847 = vweird.f32 %v1839
  %vm1848 = vweird.f32 %v1841
  %vm1849 = vmor %vm1847, %vm1848
  %v1850 = vsel %vm1849, %v1841, %v1846
  %v1851 = vrsqrt.pop %v1840
  %v1852 = vmul.f32 %v1851, %v1840
  %v1853 = vmul.f32 %v1852, %v1851
  %v1854 = vmul.f32 0.5, %v1853
  %v1855 = vsub.f32 1.5, %v1854
  %v1856 = vmul.f32 %v1851, %v1855
  %vm1857 = vweird.f32 %v1840
  %vm1858 = vweird.f32 %v1851
  %vm1859 = vmor %vm1857, %vm1858
  %v1860 = vsel %vm1859, %v1851, %v1856
  %v1861 = vmul.f32 %v1827, %v1850
  %v1862 = vmul.f32 %v1828, %v1860
  %v1864 = vperm.slane %v1817, 0
  %v1866 = vmul.f32 %v1861, %v1864
  %v1867 = vmul.f32 %v1862, %v1864
  %v1869 = vperm.slane %v1818, 0
  %v1871 = vadd.f32 %v1866, %v1869
  %v1872 = vadd.f32 %v1867, %v1869
  %v1873 = vld [vmem:[%s5] sm:$0x3]
  %v1875 = vsel %vm677, %v1873, 0
  %1877 = vmatpush.msra.mxu0 0.0
  %1878 = vmatpush.msra.mxu0 0.0
  %1879 = vmatpush.msra.mxu0 0.0
  %1880 = vmatpush.msra.mxu0 0.0
  %1881 = vmatpush.msra.mxu0 0.0
  %1882 = vmatpush.msra.mxu0 0.0
  %1883 = vmatpush.msra.mxu0 0.0
  %1884 = vmatpush.msra.mxu0 0.0
  %1885 = vmatpush.msra.mxu0 0.0
  %1886 = vmatpush.msra.mxu0 0.0
  %1887 = vmatpush.msra.mxu0 0.0
  %1888 = vmatpush.msra.mxu0 0.0
  %1889 = vmatpush.msra.mxu0 0.0
  %1890 = vmatpush.msra.mxu0 0.0
  %1891 = vmatpush.msra.mxu0 %v1872
  %1892 = vmatpush.msra.mxu0 %v1871
  %1893 = vmatmul.f32.gmra.mxu0 %v1875
  %v1894 = vpop.f32.mrf.mxu0
  %v1895 = vadd.f32 0.0, %v1894
  %1896 = vdwg.mxu0
  %v1897 = vpack.c.bf16 %v1895, %v1895
  %v1898 = vld [vmem:[%s20] sm:$0xf]
  %v1899 = vld [vmem:[%s20 + $0x4] sm:$0xf]
  %v1900 = vld [vmem:[%s20 + $0x8] sm:$0xf]
  %v1901 = vld [vmem:[%s20 + $0xc] sm:$0xf]
  %v1906 = vunpack.c.l.b16 %v1898
  %v1907 = vunpack.c.l.b16 %v1899
  %v1908 = vunpack.c.l.b16 %v1900
  %v1909 = vunpack.c.l.b16 %v1901
  %v1910 = vpack.c.b16 %v1907, %v1906
  %v1911 = vpack.c.b16 %v1909, %v1908
  %v1915 = vsel %vm81, %v1897, 0
  %1917 = vmatpush.bf16.msra.mxu0 0
  %1918 = vmatpush.bf16.msra.mxu0 0
  %1919 = vmatpush.bf16.msra.mxu0 0
  %1920 = vmatpush.bf16.msra.mxu0 0
  %1921 = vmatpush.bf16.msra.mxu0 0
  %1922 = vmatpush.bf16.msra.mxu0 0
  %1923 = vmatpush.bf16.msra.mxu0 %v1911
  %1924 = vmatpush.bf16.msra.mxu0 %v1910
  %1925 = vmatmul.bf16.gmra.mxu0 %v1915
  %v1926 = vpop.f32.mrf.mxu0
  %v1927 = vadd.f32 0.0, %v1926
  %v1928 = vpop.f32.mrf.mxu0
  %1929 = vdwg.mxu0
  %v1930 = vmul.f32 %v1927, %v1927
  %vm1931 = vcmask 254976
  %v1932 = vsel %vm1931, %v1930, 0.0
  %1933 = vadd.xlane.f32.xlu0 %v1932
  %v1934 = vpop.xlane.xlu0 %1933
  %v1935 = vrsqrt.pop %v1934
  %v1936 = vmul.f32 %v1935, %v1934
  %v1937 = vmul.f32 %v1936, %v1935
  %v1938 = vmul.f32 0.5, %v1937
  %v1939 = vsub.f32 1.5, %v1938
  %v1940 = vmul.f32 %v1935, %v1939
  %vm1941 = vweird.f32 %v1934
  %vm1942 = vweird.f32 %v1935
  %vm1943 = vmor %vm1941, %vm1942
  %v1944 = vsel %vm1943, %v1935, %v1940
  %v1945 = vmul.f32 %v1927, %v1944
  %v1946 = vld [vmem:[%s0] sm:$0xff]
  %v1947 = vld [vmem:[%s0 + $0x8] sm:$0xff]
  %v1948 = vld [vmem:[%s0 + $0x10] sm:$0xff]
  %v1949 = vld [vmem:[%s0 + $0x18] sm:$0xff]
  %v1950 = vpack.c.bf16 %v1947, %v1946
  %v1951 = vpack.c.bf16 %v1949, %v1948
  %v1952 = vld [vmem:[%s1] sm:$0xf]
  %v1953 = vld [vmem:[%s1 + $0x4] sm:$0xf]
  %v1954 = vld [vmem:[%s1 + $0x8] sm:$0xf]
  %v1955 = vld [vmem:[%s1 + $0xc] sm:$0xf]
  %v1960 = vunpack.c.l.b16 %v1952
  %v1961 = vunpack.c.l.b16 %v1953
  %v1962 = vunpack.c.l.b16 %v1954
  %v1963 = vunpack.c.l.b16 %v1955
  %v1964 = vpack.c.b16 %v1961, %v1960
  %v1965 = vpack.c.b16 %v1963, %v1962
  %v1969 = vsel %vm81, %v1950, 0
  %v1972 = vsel %vm81, %v1951, 0
  %1974 = vmatpush.bf16.msra.mxu0 0
  %1975 = vmatpush.bf16.msra.mxu0 0
  %1976 = vmatpush.bf16.msra.mxu0 0
  %1977 = vmatpush.bf16.msra.mxu0 0
  %1978 = vmatpush.bf16.msra.mxu0 0
  %1979 = vmatpush.bf16.msra.mxu0 0
  %1980 = vmatpush.bf16.msra.mxu0 %v1965
  %1981 = vmatpush.bf16.msra.mxu0 %v1964
  %1982 = vmatmul.bf16.gmra.mxu0 %v1969
  %v1983 = vpop.f32.mrf.mxu0
  %v1984 = vadd.f32 0.0, %v1983
  %v1985 = vpop.f32.mrf.mxu0
  %v1986 = vadd.f32 0.0, %v1985
  %1987 = vmatmul.bf16.gmra.mxu0 %v1972
  %v1988 = vpop.f32.mrf.mxu0
  %v1989 = vadd.f32 0.0, %v1988
  %v1990 = vpop.f32.mrf.mxu0
  %v1991 = vadd.f32 0.0, %v1990
  %1992 = vdwg.mxu0
  %v1993 = vmax.f32 %v1984, 0.0
  %v1994 = vmax.f32 %v1986, 0.0
  %v1995 = vmax.f32 %v1989, 0.0
  %v1996 = vmax.f32 %v1991, 0.0
  %v1997 = vpack.c.bf16 %v1994, %v1993
  %v1998 = vpack.c.bf16 %v1996, %v1995
  %v1999 = vld [vmem:[%s2] sm:$0xf]
  %v2001 = vsel %vm188, %v1997, 0
  %v2004 = vsel %vm188, %v1998, 0
  %v2007 = vsel %vm265, %v1999, 0
  %2009 = vmatpush.bf16.msra.mxu0 0
  %2010 = vmatpush.bf16.msra.mxu0 0
  %2011 = vmatpush.bf16.msra.mxu0 0
  %2012 = vmatpush.bf16.msra.mxu0 0
  %2013 = vmatpush.bf16.msra.mxu0 0
  %2014 = vmatpush.bf16.msra.mxu0 0
  %2015 = vmatpush.bf16.msra.mxu0 0
  %2016 = vmatpush.bf16.msra.mxu0 %v2007
  %2017 = vmatmul.bf16.gmra.mxu0 %v2001
  %v2018 = vpop.f32.mrf.mxu0
  %v2019 = vadd.f32 0.0, %v2018
  %v2020 = vpop.f32.mrf.mxu0
  %v2021 = vadd.f32 0.0, %v2020
  %2022 = vmatmul.bf16.gmra.mxu0 %v2004
  %v2023 = vpop.f32.mrf.mxu0
  %v2024 = vadd.f32 0.0, %v2023
  %v2025 = vpop.f32.mrf.mxu0
  %v2026 = vadd.f32 0.0, %v2025
  %2027 = vdwg.mxu0
  %v2028 = vmax.f32 %v2019, 0.0
  %v2029 = vmax.f32 %v2021, 0.0
  %v2030 = vmax.f32 %v2024, 0.0
  %v2031 = vmax.f32 %v2026, 0.0
  %v2032 = vmul.f32 %v2028, 0.4
  %v2033 = vmul.f32 %v2029, 0.4
  %v2034 = vmul.f32 %v2030, 0.4
  %v2035 = vmul.f32 %v2031, 0.4
  %v2036 = vmul.f32 %v1946, 0.6
  %v2037 = vmul.f32 %v1947, 0.6
  %v2038 = vmul.f32 %v1948, 0.6
  %v2039 = vmul.f32 %v1949, 0.6
  %v2040 = vadd.f32 %v2032, %v2036
  %v2041 = vadd.f32 %v2033, %v2037
  %v2042 = vadd.f32 %v2034, %v2038
  %v2043 = vadd.f32 %v2035, %v2039
  %v2044 = vmul.f32 %v2040, %v2040
  %v2045 = vmul.f32 %v2041, %v2041
  %v2046 = vmul.f32 %v2042, %v2042
  %v2047 = vmul.f32 %v2043, %v2043
  %v2048 = vsel %vm81, %v2044, 0.0
  %2049 = vadd.xlane.f32.xlu0 %v2048
  %v2050 = vpop.xlane.xlu0 %2049
  %v2051 = vsel %vm81, %v2045, 0.0
  %2052 = vadd.xlane.f32.xlu0 %v2051
  %v2053 = vpop.xlane.xlu0 %2052
  %v2054 = vsel %vm81, %v2046, 0.0
  %2055 = vadd.xlane.f32.xlu0 %v2054
  %v2056 = vpop.xlane.xlu0 %2055
  %v2057 = vsel %vm81, %v2047, 0.0
  %2058 = vadd.xlane.f32.xlu0 %v2057
  %v2059 = vpop.xlane.xlu0 %2058
  %v2060 = vrsqrt.pop %v2050
  %v2061 = vmul.f32 %v2060, %v2050
  %v2062 = vmul.f32 %v2061, %v2060
  %v2063 = vmul.f32 0.5, %v2062
  %v2064 = vsub.f32 1.5, %v2063
  %v2065 = vmul.f32 %v2060, %v2064
  %vm2066 = vweird.f32 %v2050
  %vm2067 = vweird.f32 %v2060
  %vm2068 = vmor %vm2066, %vm2067
  %v2069 = vsel %vm2068, %v2060, %v2065
  %v2070 = vrsqrt.pop %v2053
  %v2071 = vmul.f32 %v2070, %v2053
  %v2072 = vmul.f32 %v2071, %v2070
  %v2073 = vmul.f32 0.5, %v2072
  %v2074 = vsub.f32 1.5, %v2073
  %v2075 = vmul.f32 %v2070, %v2074
  %vm2076 = vweird.f32 %v2053
  %vm2077 = vweird.f32 %v2070
  %vm2078 = vmor %vm2076, %vm2077
  %v2079 = vsel %vm2078, %v2070, %v2075
  %v2080 = vrsqrt.pop %v2056
  %v2081 = vmul.f32 %v2080, %v2056
  %v2082 = vmul.f32 %v2081, %v2080
  %v2083 = vmul.f32 0.5, %v2082
  %v2084 = vsub.f32 1.5, %v2083
  %v2085 = vmul.f32 %v2080, %v2084
  %vm2086 = vweird.f32 %v2056
  %vm2087 = vweird.f32 %v2080
  %vm2088 = vmor %vm2086, %vm2087
  %v2089 = vsel %vm2088, %v2080, %v2085
  %v2090 = vrsqrt.pop %v2059
  %v2091 = vmul.f32 %v2090, %v2059
  %v2092 = vmul.f32 %v2091, %v2090
  %v2093 = vmul.f32 0.5, %v2092
  %v2094 = vsub.f32 1.5, %v2093
  %v2095 = vmul.f32 %v2090, %v2094
  %vm2096 = vweird.f32 %v2059
  %vm2097 = vweird.f32 %v2090
  %vm2098 = vmor %vm2096, %vm2097
  %v2099 = vsel %vm2098, %v2090, %v2095
  %v2100 = vmul.f32 %v2040, %v2069
  %v2101 = vmul.f32 %v2041, %v2079
  %v2102 = vmul.f32 %v2042, %v2089
  %v2103 = vmul.f32 %v2043, %v2099
  %v2104 = vld [vmem:[#allocation2] sm:$0x1]
  %v2105 = vmul.f32 %v2104, 1.442695
  %v2106 = vpow.pop %v2105
  %v2107 = vpack.c.bf16 %v1945, %v1945
  %v2108 = vpack.c.bf16 %v2101, %v2100
  %v2109 = vpack.c.bf16 %v2103, %v2102
  %v2111 = vsel %vm81, %v2107, 0
  %v2114 = vsel %vm81, %v2108, 0
  %v2117 = vsel %vm81, %v2109, 0
  %2119 = vmatpush.bf16.xpose.msra.mxu0 0
  %2120 = vmatpush.bf16.xpose.msra.mxu0 0
  %2121 = vmatpush.bf16.xpose.msra.mxu0 0
  %2122 = vmatpush.bf16.xpose.msra.mxu0 0
  %2123 = vmatpush.bf16.xpose.msra.mxu0 0
  %2124 = vmatpush.bf16.xpose.msra.mxu0 0
  %2125 = vmatpush.bf16.xpose.msra.mxu0 %v2117
  %2126 = vmatpush.bf16.xpose.msra.mxu0 %v2114
  %2127 = vmatmul.bf16.gmra.mxu0 %v2111
  %v2128 = vpop.f32.mrf.mxu0
  %v2129 = vadd.f32 0.0, %v2128
  %v2130 = vpop.f32.mrf.mxu0
  %2131 = vdwg.mxu0
  %v2133 = vperm.slane %v2106, 0
  %2134 = vset.pattern.permute.xlu0 0
  %2135 = vperm.xlu0 %2134, %v2133
  %v2136 = vpop.permute.xlu0 %2135
  %v2138 = vmul.f32 %v2136, %v2129
  %2139 = vst.msk [vmem:[%s21] sm:$0x3] %vm1931, %v2138
  // Predicated region
  $region86: #{custom_clip_forward.1} parent=0 // pred_check
    _
  $region87: #{custom_clip_forward.1} parent=0 // pred_check_branch
    %2141 = sbr.rel (0) target = $region89
  $region88: #{custom_clip_forward.1} parent=0 // pred_region
    _
  $region89: #{custom_clip_forward.1} parent=0 // pred_fallthru
    _
  // Predicated region
  $region90: #{custom_clip_forward.1} parent=0 // pred_check
    _
  $region91: #{custom_clip_forward.1} parent=0 // pred_check_branch
    %2143 = sbr.rel (0) target = $region93
  $region92: #{custom_clip_forward.1} parent=0 // pred_region
    _
  $region93: #{custom_clip_forward.1} parent=0 // pred_fallthru
    _

</llo_original>
